<compile_context>
chip_gen: v7x
topology: tpu7x:2x2x1
jax: 0.10.0
libtpu: 0.0.40
codegen_flags: <defaults>
</compile_context>

<pallas_src>
import math
import jax
import jax.numpy as jnp
from jax.experimental import pallas as pl
from jax.experimental.pallas import tpu as pltpu

# ---- ModelArgs (d_model=32, defaults for everything else) -------------------
D_MODEL = 32
D_STATE = 16
EXPAND = 2
D_CONV = 4
D_INNER = EXPAND * D_MODEL            # 64
DT_RANK = math.ceil(D_MODEL / 16)     # 2
DT_MIN, DT_MAX, DT_INIT_FLOOR = 1e-3, 1e-1, 1e-4

BATCH = 2
SEQ = 8


def _silu(z):
    return z * (1.0 / (1.0 + jnp.exp(-z)))


def _softplus(z):
    # numerically-safe softplus (same formula used by kernel and reference)
    return jnp.where(z > 20.0, z, jnp.log1p(jnp.exp(jnp.minimum(z, 20.0))))


# ----------------------------- Pallas kernel --------------------------------
def mamba_kernel(x_ref, w_in_ref, small_ref, w_xproj_ref, dt_w_ref,
                 A_logT_ref, w_out_ref, o_ref):
    f32 = jnp.float32
    x = x_ref[0]                                   # (l, d_model)
    l = x.shape[0]
    d_inner = w_in_ref.shape[1] // 2
    n = A_logT_ref.shape[0]
    dt_rank = dt_w_ref.shape[0]

    # ---- fused in_proj: one lane-dense (l, 2*d_inner) matmul, then split ----
    xres = jnp.dot(x, w_in_ref[...], preferred_element_type=f32)   # (l, 2*d_inner)
    xs = xres[:, :d_inner]                                         # (l, d_inner)
    res = xres[:, d_inner:]                                        # (l, d_inner)

    # ---- unpack small packed params (one (8, d_inner) tile) ----
    conv_w = small_ref[0:D_CONV, :]                 # (d_conv, d_inner)
    conv_b = small_ref[D_CONV:D_CONV + 1, :]        # (1, d_inner)
    dt_b = small_ref[D_CONV + 1:D_CONV + 2, :]      # (1, d_inner)
    D_vec = small_ref[D_CONV + 2:D_CONV + 3, :]     # (1, d_inner)

    # ---- causal depthwise conv1d: zero-padded view + static tap slices ----
    padded = jnp.concatenate(
        [jnp.zeros((D_CONV - 1, d_inner), f32), xs], axis=0)       # (l+d_conv-1, d_inner)
    conv = conv_b + padded[0:l, :] * conv_w[0:1, :]
    for j in range(1, D_CONV):
        conv = conv + padded[j:j + l, :] * conv_w[j:j + 1, :]
    u = _silu(conv)                                                # (l, d_inner)

    # ---- fused x_proj: one (l, dt_rank + 2n) matmul, then split ----
    x_dbl = jnp.dot(u, w_xproj_ref[...], preferred_element_type=f32)
    delta_raw = x_dbl[:, :dt_rank]                                 # (l, dt_rank)
    B = x_dbl[:, dt_rank:dt_rank + n]                              # (l, n)
    C = x_dbl[:, dt_rank + n:dt_rank + 2 * n]                      # (l, n)
    delta = _softplus(
        jnp.dot(delta_raw, dt_w_ref[...], preferred_element_type=f32) + dt_b
    )                                                              # (l, d_inner)

    # ---- selective scan ----
    # Hoist the exp() and the outer products out of the serial recurrence:
    # precompute dA / dBu for all timesteps so the loop body is 2 VPU ops.
    A_T = -jnp.exp(A_logT_ref[...])                                # (n, d_inner)
    du = delta * u                                                 # (l, d_inner)
    dA = jnp.exp(delta[:, None, :] * A_T[None, :, :])              # (l, n, d_inner)
    dBu = B[:, :, None] * du[:, None, :]                           # (l, n, d_inner)

    h = jnp.zeros((n, d_inner), f32)
    hs = []
    for i in range(l):
        h = dA[i] * h + dBu[i]
        hs.append(h)
    H = jnp.stack(hs, axis=0)                                      # (l, n, d_inner)

    # C-contraction done once, outside the recurrence, on VPU + XLU
    ys = jnp.sum(C[:, :, None] * H, axis=1)                        # (l, d_inner)

    y = (ys + u * D_vec) * _silu(res)
    o_ref[0] = jnp.dot(y, w_out_ref[...], preferred_element_type=f32)


def mamba_block(x, P):
    b, l, d = x.shape
    # Host-side param packing (traced by XLA, negligible cost):
    w_in_T = jnp.concatenate([P["w_x_T"], P["w_res_T"]], axis=1)        # (d_model, 2*d_inner)
    w_xproj_T = jnp.concatenate(
        [P["w_delta_T"], P["w_B_T"], P["w_C_T"]], axis=1)               # (d_inner, dt_rank+2n)
    small = jnp.concatenate(
        [P["conv_w_T"], P["conv_b"], P["dt_b"], P["D"],
         jnp.zeros((1, D_INNER), jnp.float32)], axis=0)                 # (8, d_inner)

    param_list = [w_in_T, small, w_xproj_T, P["dt_w_T"], P["A_log_T"], P["w_out_T"]]

    in_specs = [pl.BlockSpec((1, l, d), lambda i: (i, 0, 0))]
    in_specs += [pl.BlockSpec(p.shape, lambda i: (0, 0)) for p in param_list]

    return pl.pallas_call(
        mamba_kernel,
        out_shape=jax.ShapeDtypeStruct((b, l, d), jnp.float32),
        grid_spec=pltpu.PrefetchScalarGridSpec(
            num_scalar_prefetch=0,
            grid=(b,),
            in_specs=in_specs,
            out_specs=pl.BlockSpec((1, l, d), lambda i: (i, 0, 0)),
        ),
        compiler_params=pltpu.CompilerParams(
            dimension_semantics=("parallel",)),   # batch elems independent -> v7x megacore
    )(x, *param_list)


# ----------------------------- pure-JAX reference ----------------------------
def mamba_ref(x, P):
    def one(xb):                                       # xb: (l, d_model)
        l = xb.shape[0]
        xs = xb @ P["w_x_T"]
        res = xb @ P["w_res_T"]
        conv = jnp.zeros((l, D_INNER), jnp.float32)
        for j in range(D_CONV):
            tap = P["conv_w_T"][D_CONV - 1 - j]
            shifted = xs if j == 0 else jnp.pad(xs, ((j, 0), (0, 0)))[:l]
            conv = conv + shifted * tap[None, :]
        conv = conv + P["conv_b"]
        u = _silu(conv)
        delta_raw = u @ P["w_delta_T"]
        B = u @ P["w_B_T"]
        C = u @ P["w_C_T"]
        delta = _softplus(delta_raw @ P["dt_w_T"] + P["dt_b"])
        A = -jnp.exp(P["A_log_T"].T)                   # (d_inner, n)
        h = jnp.zeros((D_INNER, D_STATE), jnp.float32)
        ys = []
        for i in range(l):
            dA = jnp.exp(delta[i][:, None] * A)
            dBu = delta[i][:, None] * B[i][None, :] * u[i][:, None]
            h = dA * h + dBu
            ys.append(h @ C[i])
        y = jnp.stack(ys, 0) + u * P["D"][0]
        y = y * _silu(res)
        return y @ P["w_out_T"]

    return jax.vmap(one)(x)


# ----------------------------- parameter init --------------------------------
def init_params(key):
    ks = jax.random.split(key, 7)

    def unif(k, shape, scale):
        return jax.random.uniform(k, shape, jnp.float32, -scale, scale)

    w_in = unif(ks[0], (2 * D_INNER, D_MODEL), 1.0 / math.sqrt(D_MODEL))
    conv_w = unif(ks[1], (D_INNER, D_CONV), 1.0 / math.sqrt(D_CONV))
    conv_b = unif(ks[2], (1, D_INNER), 1.0 / math.sqrt(D_CONV))
    x_proj_w = unif(ks[3], (DT_RANK + 2 * D_STATE, D_INNER), 1.0 / math.sqrt(D_INNER))
    dt_init_std = DT_RANK ** -0.5
    dt_w = unif(ks[4], (D_INNER, DT_RANK), dt_init_std)
    dt = jnp.exp(jax.random.uniform(ks[5], (D_INNER,), jnp.float32)
                 * (math.log(DT_MAX) - math.log(DT_MIN)) + math.log(DT_MIN))
    dt = jnp.maximum(dt, DT_INIT_FLOOR)
    inv_dt = dt + jnp.log(-jnp.expm1(-dt))             # softplus inverse of dt
    out_w = unif(ks[6], (D_MODEL, D_INNER), 1.0 / math.sqrt(D_INNER))

    A_log_T = jnp.broadcast_to(
        jnp.log(jnp.arange(1, D_STATE + 1, dtype=jnp.float32))[:, None],
        (D_STATE, D_INNER))

    return {
        "w_x_T": w_in[:D_INNER].T,                     # (d_model, d_inner)
        "w_res_T": w_in[D_INNER:].T,                   # (d_model, d_inner)
        "conv_w_T": conv_w.T,                          # (d_conv, d_inner)
        "conv_b": conv_b,                              # (1, d_inner)
        "w_delta_T": x_proj_w[:DT_RANK].T,             # (d_inner, dt_rank)
        "w_B_T": x_proj_w[DT_RANK:DT_RANK + D_STATE].T,    # (d_inner, n)
        "w_C_T": x_proj_w[DT_RANK + D_STATE:].T,           # (d_inner, n)
        "dt_w_T": dt_w.T,                              # (dt_rank, d_inner)
        "dt_b": inv_dt[None, :],                       # (1, d_inner)
        "A_log_T": A_log_T,                            # (n, d_inner)
        "D": jnp.ones((1, D_INNER), jnp.float32),      # (1, d_inner)
        "w_out_T": out_w.T,                            # (d_inner, d_model)
    }


if __name__ == "__main__":
    key = jax.random.PRNGKey(0)
    kx, kp = jax.random.split(key)
    x = jax.random.normal(kx, (BATCH, SEQ, D_MODEL), jnp.float32)
    params = init_params(kp)

    out = mamba_block(x, params)
    out = jax.block_until_ready(out)

    ref = jax.block_until_ready(mamba_ref(x, params))
    assert out.shape == (BATCH, SEQ, D_MODEL)
    assert jnp.allclose(out, ref, rtol=1e-2, atol=1e-2), (
        f"max abs diff {jnp.max(jnp.abs(out - ref))}")

    print("KERNEL_OK")
</pallas_src>

<mosaic_0001>
module attributes {stable_mosaic.version = 11 : i64} {
  func.func @mamba_kernel(%arg0: i32, %arg1: memref<1x8x32xf32, #tpu.memory_space<vmem>>, %arg2: memref<32x128xf32, #tpu.memory_space<vmem>>, %arg3: memref<8x64xf32, #tpu.memory_space<vmem>>, %arg4: memref<64x34xf32, #tpu.memory_space<vmem>>, %arg5: memref<2x64xf32, #tpu.memory_space<vmem>>, %arg6: memref<16x64xf32, #tpu.memory_space<vmem>>, %arg7: memref<64x32xf32, #tpu.memory_space<vmem>>, %arg8: memref<1x8x32xf32, #tpu.memory_space<vmem>>) attributes {dimension_semantics = [#tpu.dimension_semantics<parallel>], iteration_bounds = array<i64: 2>, scalar_prefetch = 0 : i64, scratch_operands = 0 : i64, tpu.core_type = #tpu.core_type<tc>, window_params = [{transform_indices = @transform_0, window_bounds = array<i64: 1, 8, 32>}, {pipeline_mode = #tpu.pipeline_mode<synchronous>, transform_indices = @transform_1, window_bounds = array<i64: 32, 128>}, {pipeline_mode = #tpu.pipeline_mode<synchronous>, transform_indices = @transform_2, window_bounds = array<i64: 8, 64>}, {pipeline_mode = #tpu.pipeline_mode<synchronous>, transform_indices = @transform_3, window_bounds = array<i64: 64, 34>}, {pipeline_mode = #tpu.pipeline_mode<synchronous>, transform_indices = @transform_4, window_bounds = array<i64: 2, 64>}, {pipeline_mode = #tpu.pipeline_mode<synchronous>, transform_indices = @transform_5, window_bounds = array<i64: 16, 64>}, {pipeline_mode = #tpu.pipeline_mode<synchronous>, transform_indices = @transform_6, window_bounds = array<i64: 64, 32>}, {transform_indices = @transform_7, window_bounds = array<i64: 1, 8, 32>}]} {
    %c0 = arith.constant 0 : index
    %c0_0 = arith.constant 0 : index
    %c0_1 = arith.constant 0 : index
    %0 = vector.load %arg1[%c0, %c0_0, %c0_1] : memref<1x8x32xf32, #tpu.memory_space<vmem>>, vector<1x8x32xf32>
    %1 = vector.shape_cast %0 : vector<1x8x32xf32> to vector<8x32xf32>
    %c0_2 = arith.constant 0 : index
    %c0_3 = arith.constant 0 : index
    %2 = vector.load %arg2[%c0_2, %c0_3] : memref<32x128xf32, #tpu.memory_space<vmem>>, vector<32x128xf32>
    %cst = arith.constant dense<0.000000e+00> : vector<8x128xf32>
    %3 = tpu.matmul %1, %2, %cst {dimension_numbers = #tpu.dot_dimension_numbers<[1], [0], [0], [1], [0, 0, 1, 1], [], []>} : vector<8x32xf32>, vector<32x128xf32>, vector<8x128xf32> -> vector<8x128xf32>
    %4 = vector.extract_strided_slice %3 {offsets = [0, 0], sizes = [8, 64], strides = [1, 1]} : vector<8x128xf32> to vector<8x64xf32>
    %5 = vector.extract_strided_slice %3 {offsets = [0, 64], sizes = [8, 64], strides = [1, 1]} : vector<8x128xf32> to vector<8x64xf32>
    %c0_4 = arith.constant 0 : index
    %c0_5 = arith.constant 0 : index
    %6 = vector.load %arg3[%c0_4, %c0_5] : memref<8x64xf32, #tpu.memory_space<vmem>>, vector<4x64xf32>
    %c4 = arith.constant 4 : index
    %c0_6 = arith.constant 0 : index
    %7 = vector.load %arg3[%c4, %c0_6] : memref<8x64xf32, #tpu.memory_space<vmem>>, vector<1x64xf32>
    %c5 = arith.constant 5 : index
    %c0_7 = arith.constant 0 : index
    %8 = vector.load %arg3[%c5, %c0_7] : memref<8x64xf32, #tpu.memory_space<vmem>>, vector<1x64xf32>
    %c6 = arith.constant 6 : index
    %c0_8 = arith.constant 0 : index
    %9 = vector.load %arg3[%c6, %c0_8] : memref<8x64xf32, #tpu.memory_space<vmem>>, vector<1x64xf32>
    %cst_9 = arith.constant 0.000000e+00 : f32
    %10 = vector.broadcast %cst_9 : f32 to vector<3x64xf32>
    %11 = tpu.concatenate %10, %4 in 0 : vector<3x64xf32>, vector<8x64xf32> -> vector<11x64xf32>
    %12 = vector.extract_strided_slice %11 {offsets = [0, 0], sizes = [8, 64], strides = [1, 1]} : vector<11x64xf32> to vector<8x64xf32>
    %13 = vector.extract_strided_slice %6 {offsets = [0, 0], sizes = [1, 64], strides = [1, 1]} : vector<4x64xf32> to vector<1x64xf32>
    %14 = vector.broadcast %13 : vector<1x64xf32> to vector<8x64xf32>
    %15 = arith.mulf %12, %14 : vector<8x64xf32>
    %16 = vector.broadcast %7 : vector<1x64xf32> to vector<8x64xf32>
    %17 = arith.addf %16, %15 : vector<8x64xf32>
    %18 = vector.extract_strided_slice %11 {offsets = [1, 0], sizes = [8, 64], strides = [1, 1]} : vector<11x64xf32> to vector<8x64xf32>
    %19 = vector.extract_strided_slice %6 {offsets = [1, 0], sizes = [1, 64], strides = [1, 1]} : vector<4x64xf32> to vector<1x64xf32>
    %20 = vector.broadcast %19 : vector<1x64xf32> to vector<8x64xf32>
    %21 = arith.mulf %18, %20 : vector<8x64xf32>
    %22 = arith.addf %17, %21 : vector<8x64xf32>
    %23 = vector.extract_strided_slice %11 {offsets = [2, 0], sizes = [8, 64], strides = [1, 1]} : vector<11x64xf32> to vector<8x64xf32>
    %24 = vector.extract_strided_slice %6 {offsets = [2, 0], sizes = [1, 64], strides = [1, 1]} : vector<4x64xf32> to vector<1x64xf32>
    %25 = vector.broadcast %24 : vector<1x64xf32> to vector<8x64xf32>
    %26 = arith.mulf %23, %25 : vector<8x64xf32>
    %27 = arith.addf %22, %26 : vector<8x64xf32>
    %28 = vector.extract_strided_slice %11 {offsets = [3, 0], sizes = [8, 64], strides = [1, 1]} : vector<11x64xf32> to vector<8x64xf32>
    %29 = vector.extract_strided_slice %6 {offsets = [3, 0], sizes = [1, 64], strides = [1, 1]} : vector<4x64xf32> to vector<1x64xf32>
    %30 = vector.broadcast %29 : vector<1x64xf32> to vector<8x64xf32>
    %31 = arith.mulf %28, %30 : vector<8x64xf32>
    %32 = arith.addf %27, %31 : vector<8x64xf32>
    %cst_10 = arith.constant 0.000000e+00 : f32
    %33 = vector.broadcast %cst_10 : f32 to vector<8x64xf32>
    %34 = arith.subf %33, %32 : vector<8x64xf32>
    %35 = math.exp %34 : vector<8x64xf32>
    %cst_11 = arith.constant 1.000000e+00 : f32
    %36 = vector.broadcast %cst_11 : f32 to vector<8x64xf32>
    %37 = arith.addf %36, %35 : vector<8x64xf32>
    %cst_12 = arith.constant 1.000000e+00 : f32
    %38 = vector.broadcast %cst_12 : f32 to vector<8x64xf32>
    %39 = arith.divf %38, %37 : vector<8x64xf32>
    %40 = arith.mulf %32, %39 : vector<8x64xf32>
    %c0_13 = arith.constant 0 : index
    %c0_14 = arith.constant 0 : index
    %41 = vector.load %arg4[%c0_13, %c0_14] : memref<64x34xf32, #tpu.memory_space<vmem>>, vector<64x34xf32>
    %cst_15 = arith.constant dense<0.000000e+00> : vector<8x34xf32>
    %42 = tpu.matmul %40, %41, %cst_15 {dimension_numbers = #tpu.dot_dimension_numbers<[1], [0], [0], [1], [0, 0, 1, 1], [], []>} : vector<8x64xf32>, vector<64x34xf32>, vector<8x34xf32> -> vector<8x34xf32>
    %43 = vector.extract_strided_slice %42 {offsets = [0, 0], sizes = [8, 2], strides = [1, 1]} : vector<8x34xf32> to vector<8x2xf32>
    %44 = vector.extract_strided_slice %42 {offsets = [0, 2], sizes = [8, 16], strides = [1, 1]} : vector<8x34xf32> to vector<8x16xf32>
    %45 = vector.extract_strided_slice %42 {offsets = [0, 18], sizes = [8, 16], strides = [1, 1]} : vector<8x34xf32> to vector<8x16xf32>
    %c0_16 = arith.constant 0 : index
    %c0_17 = arith.constant 0 : index
    %46 = vector.load %arg5[%c0_16, %c0_17] : memref<2x64xf32, #tpu.memory_space<vmem>>, vector<2x64xf32>
    %cst_18 = arith.constant dense<0.000000e+00> : vector<8x64xf32>
    %47 = tpu.matmul %43, %46, %cst_18 {dimension_numbers = #tpu.dot_dimension_numbers<[1], [0], [0], [1], [0, 0, 1, 1], [], []>} : vector<8x2xf32>, vector<2x64xf32>, vector<8x64xf32> -> vector<8x64xf32>
    %48 = vector.broadcast %8 : vector<1x64xf32> to vector<8x64xf32>
    %49 = arith.addf %47, %48 : vector<8x64xf32>
    %cst_19 = arith.constant 2.000000e+01 : f32
    %50 = vector.broadcast %cst_19 : f32 to vector<8x64xf32>
    %51 = arith.cmpf ogt, %49, %50 : vector<8x64xf32>
    %cst_20 = arith.constant 2.000000e+01 : f32
    %52 = vector.broadcast %cst_20 : f32 to vector<8x64xf32>
    %53 = arith.minimumf %49, %52 : vector<8x64xf32>
    %54 = math.exp %53 : vector<8x64xf32>
    %55 = math.log1p %54 : vector<8x64xf32>
    %56 = arith.select %51, %49, %55 : vector<8x64xi1>, vector<8x64xf32>
    %c0_21 = arith.constant 0 : index
    %c0_22 = arith.constant 0 : index
    %57 = vector.load %arg6[%c0_21, %c0_22] : memref<16x64xf32, #tpu.memory_space<vmem>>, vector<16x64xf32>
    %58 = math.exp %57 : vector<16x64xf32>
    %cst_23 = arith.constant 0.000000e+00 : f32
    %59 = vector.broadcast %cst_23 : f32 to vector<16x64xf32>
    %60 = arith.subf %59, %58 : vector<16x64xf32>
    %61 = arith.mulf %56, %40 : vector<8x64xf32>
    %62 = vector.shape_cast %56 : vector<8x64xf32> to vector<8x1x64xf32>
    %63 = vector.shape_cast %60 : vector<16x64xf32> to vector<1x16x64xf32>
    %64 = vector.broadcast %62 : vector<8x1x64xf32> to vector<8x16x64xf32>
    %65 = vector.broadcast %63 : vector<1x16x64xf32> to vector<8x16x64xf32>
    %66 = arith.mulf %64, %65 : vector<8x16x64xf32>
    %67 = math.exp %66 : vector<8x16x64xf32>
    %68 = vector.shape_cast %44 : vector<8x16xf32> to vector<8x16x1xf32>
    %69 = vector.shape_cast %61 : vector<8x64xf32> to vector<8x1x64xf32>
    %70 = vector.broadcast %68 : vector<8x16x1xf32> to vector<8x16x64xf32>
    %71 = vector.broadcast %69 : vector<8x1x64xf32> to vector<8x16x64xf32>
    %72 = arith.mulf %70, %71 : vector<8x16x64xf32>
    %cst_24 = arith.constant 0.000000e+00 : f32
    %73 = vector.broadcast %cst_24 : f32 to vector<16x64xf32>
    %74 = vector.extract_strided_slice %67 {offsets = [0, 0, 0], sizes = [1, 16, 64], strides = [1, 1, 1]} : vector<8x16x64xf32> to vector<1x16x64xf32>
    %75 = vector.shape_cast %74 : vector<1x16x64xf32> to vector<16x64xf32>
    %76 = arith.mulf %75, %73 : vector<16x64xf32>
    %77 = vector.extract_strided_slice %72 {offsets = [0, 0, 0], sizes = [1, 16, 64], strides = [1, 1, 1]} : vector<8x16x64xf32> to vector<1x16x64xf32>
    %78 = vector.shape_cast %77 : vector<1x16x64xf32> to vector<16x64xf32>
    %79 = arith.addf %76, %78 : vector<16x64xf32>
    %80 = vector.extract_strided_slice %67 {offsets = [1, 0, 0], sizes = [1, 16, 64], strides = [1, 1, 1]} : vector<8x16x64xf32> to vector<1x16x64xf32>
    %81 = vector.shape_cast %80 : vector<1x16x64xf32> to vector<16x64xf32>
    %82 = arith.mulf %81, %79 : vector<16x64xf32>
    %83 = vector.extract_strided_slice %72 {offsets = [1, 0, 0], sizes = [1, 16, 64], strides = [1, 1, 1]} : vector<8x16x64xf32> to vector<1x16x64xf32>
    %84 = vector.shape_cast %83 : vector<1x16x64xf32> to vector<16x64xf32>
    %85 = arith.addf %82, %84 : vector<16x64xf32>
    %86 = vector.extract_strided_slice %67 {offsets = [2, 0, 0], sizes = [1, 16, 64], strides = [1, 1, 1]} : vector<8x16x64xf32> to vector<1x16x64xf32>
    %87 = vector.shape_cast %86 : vector<1x16x64xf32> to vector<16x64xf32>
    %88 = arith.mulf %87, %85 : vector<16x64xf32>
    %89 = vector.extract_strided_slice %72 {offsets = [2, 0, 0], sizes = [1, 16, 64], strides = [1, 1, 1]} : vector<8x16x64xf32> to vector<1x16x64xf32>
    %90 = vector.shape_cast %89 : vector<1x16x64xf32> to vector<16x64xf32>
    %91 = arith.addf %88, %90 : vector<16x64xf32>
    %92 = vector.extract_strided_slice %67 {offsets = [3, 0, 0], sizes = [1, 16, 64], strides = [1, 1, 1]} : vector<8x16x64xf32> to vector<1x16x64xf32>
    %93 = vector.shape_cast %92 : vector<1x16x64xf32> to vector<16x64xf32>
    %94 = arith.mulf %93, %91 : vector<16x64xf32>
    %95 = vector.extract_strided_slice %72 {offsets = [3, 0, 0], sizes = [1, 16, 64], strides = [1, 1, 1]} : vector<8x16x64xf32> to vector<1x16x64xf32>
    %96 = vector.shape_cast %95 : vector<1x16x64xf32> to vector<16x64xf32>
    %97 = arith.addf %94, %96 : vector<16x64xf32>
    %98 = vector.extract_strided_slice %67 {offsets = [4, 0, 0], sizes = [1, 16, 64], strides = [1, 1, 1]} : vector<8x16x64xf32> to vector<1x16x64xf32>
    %99 = vector.shape_cast %98 : vector<1x16x64xf32> to vector<16x64xf32>
    %100 = arith.mulf %99, %97 : vector<16x64xf32>
    %101 = vector.extract_strided_slice %72 {offsets = [4, 0, 0], sizes = [1, 16, 64], strides = [1, 1, 1]} : vector<8x16x64xf32> to vector<1x16x64xf32>
    %102 = vector.shape_cast %101 : vector<1x16x64xf32> to vector<16x64xf32>
    %103 = arith.addf %100, %102 : vector<16x64xf32>
    %104 = vector.extract_strided_slice %67 {offsets = [5, 0, 0], sizes = [1, 16, 64], strides = [1, 1, 1]} : vector<8x16x64xf32> to vector<1x16x64xf32>
    %105 = vector.shape_cast %104 : vector<1x16x64xf32> to vector<16x64xf32>
    %106 = arith.mulf %105, %103 : vector<16x64xf32>
    %107 = vector.extract_strided_slice %72 {offsets = [5, 0, 0], sizes = [1, 16, 64], strides = [1, 1, 1]} : vector<8x16x64xf32> to vector<1x16x64xf32>
    %108 = vector.shape_cast %107 : vector<1x16x64xf32> to vector<16x64xf32>
    %109 = arith.addf %106, %108 : vector<16x64xf32>
    %110 = vector.extract_strided_slice %67 {offsets = [6, 0, 0], sizes = [1, 16, 64], strides = [1, 1, 1]} : vector<8x16x64xf32> to vector<1x16x64xf32>
    %111 = vector.shape_cast %110 : vector<1x16x64xf32> to vector<16x64xf32>
    %112 = arith.mulf %111, %109 : vector<16x64xf32>
    %113 = vector.extract_strided_slice %72 {offsets = [6, 0, 0], sizes = [1, 16, 64], strides = [1, 1, 1]} : vector<8x16x64xf32> to vector<1x16x64xf32>
    %114 = vector.shape_cast %113 : vector<1x16x64xf32> to vector<16x64xf32>
    %115 = arith.addf %112, %114 : vector<16x64xf32>
    %116 = vector.extract_strided_slice %67 {offsets = [7, 0, 0], sizes = [1, 16, 64], strides = [1, 1, 1]} : vector<8x16x64xf32> to vector<1x16x64xf32>
    %117 = vector.shape_cast %116 : vector<1x16x64xf32> to vector<16x64xf32>
    %118 = arith.mulf %117, %115 : vector<16x64xf32>
    %119 = vector.extract_strided_slice %72 {offsets = [7, 0, 0], sizes = [1, 16, 64], strides = [1, 1, 1]} : vector<8x16x64xf32> to vector<1x16x64xf32>
    %120 = vector.shape_cast %119 : vector<1x16x64xf32> to vector<16x64xf32>
    %121 = arith.addf %118, %120 : vector<16x64xf32>
    %122 = vector.shape_cast %79 : vector<16x64xf32> to vector<1x16x64xf32>
    %123 = vector.shape_cast %85 : vector<16x64xf32> to vector<1x16x64xf32>
    %124 = vector.shape_cast %91 : vector<16x64xf32> to vector<1x16x64xf32>
    %125 = vector.shape_cast %97 : vector<16x64xf32> to vector<1x16x64xf32>
    %126 = vector.shape_cast %103 : vector<16x64xf32> to vector<1x16x64xf32>
    %127 = vector.shape_cast %109 : vector<16x64xf32> to vector<1x16x64xf32>
    %128 = vector.shape_cast %115 : vector<16x64xf32> to vector<1x16x64xf32>
    %129 = vector.shape_cast %121 : vector<16x64xf32> to vector<1x16x64xf32>
    %130 = tpu.concatenate %122, %123, %124, %125, %126, %127, %128, %129 in 0 : vector<1x16x64xf32>, vector<1x16x64xf32>, vector<1x16x64xf32>, vector<1x16x64xf32>, vector<1x16x64xf32>, vector<1x16x64xf32>, vector<1x16x64xf32>, vector<1x16x64xf32> -> vector<8x16x64xf32>
    %131 = vector.shape_cast %45 : vector<8x16xf32> to vector<8x16x1xf32>
    %132 = vector.broadcast %131 : vector<8x16x1xf32> to vector<8x16x64xf32>
    %133 = arith.mulf %132, %130 : vector<8x16x64xf32>
    %cst_25 = arith.constant dense<0.000000e+00> : vector<8x64xf32>
    %134 = vector.multi_reduction <add>, %133, %cst_25 [1] : vector<8x16x64xf32> to vector<8x64xf32>
    %135 = vector.broadcast %9 : vector<1x64xf32> to vector<8x64xf32>
    %136 = arith.mulf %40, %135 : vector<8x64xf32>
    %137 = arith.addf %134, %136 : vector<8x64xf32>
    %cst_26 = arith.constant 0.000000e+00 : f32
    %138 = vector.broadcast %cst_26 : f32 to vector<8x64xf32>
    %139 = arith.subf %138, %5 : vector<8x64xf32>
    %140 = math.exp %139 : vector<8x64xf32>
    %cst_27 = arith.constant 1.000000e+00 : f32
    %141 = vector.broadcast %cst_27 : f32 to vector<8x64xf32>
    %142 = arith.addf %141, %140 : vector<8x64xf32>
    %cst_28 = arith.constant 1.000000e+00 : f32
    %143 = vector.broadcast %cst_28 : f32 to vector<8x64xf32>
    %144 = arith.divf %143, %142 : vector<8x64xf32>
    %145 = arith.mulf %5, %144 : vector<8x64xf32>
    %146 = arith.mulf %137, %145 : vector<8x64xf32>
    %c0_29 = arith.constant 0 : index
    %c0_30 = arith.constant 0 : index
    %147 = vector.load %arg7[%c0_29, %c0_30] : memref<64x32xf32, #tpu.memory_space<vmem>>, vector<64x32xf32>
    %cst_31 = arith.constant dense<0.000000e+00> : vector<8x32xf32>
    %148 = tpu.matmul %146, %147, %cst_31 {dimension_numbers = #tpu.dot_dimension_numbers<[1], [0], [0], [1], [0, 0, 1, 1], [], []>} : vector<8x64xf32>, vector<64x32xf32>, vector<8x32xf32> -> vector<8x32xf32>
    %c0_32 = arith.constant 0 : index
    %c0_33 = arith.constant 0 : index
    %c0_34 = arith.constant 0 : index
    %149 = vector.load %arg8[%c0_32, %c0_33, %c0_34] : memref<1x8x32xf32, #tpu.memory_space<vmem>>, vector<1x8x32xf32>
    %150 = vector.shape_cast %149 : vector<1x8x32xf32> to vector<8x32xf32>
    %151 = vector.shape_cast %148 : vector<8x32xf32> to vector<1x8x32xf32>
    tpu.vector_store %arg8[%c0_32, %c0_33, %c0_34], %151 {strides = array<i32>} : memref<1x8x32xf32, #tpu.memory_space<vmem>>, vector<1x8x32xf32>,
    return
  }
  func.func @transform_0(%arg0: i32) -> (i32, i32, i32) {
    %c0_i32 = arith.constant 0 : i32
    %c0_i32_0 = arith.constant 0 : i32
    %c0_i32_1 = arith.constant 0 : i32
    return %arg0, %c0_i32, %c0_i32_0 : i32, i32, i32
  }
  func.func @transform_1(%arg0: i32) -> (i32, i32) {
    %c0_i32 = arith.constant 0 : i32
    %c0_i32_0 = arith.constant 0 : i32
    %c0_i32_1 = arith.constant 0 : i32
    return %c0_i32, %c0_i32_0 : i32, i32
  }
  func.func @transform_2(%arg0: i32) -> (i32, i32) {
    %c0_i32 = arith.constant 0 : i32
    %c0_i32_0 = arith.constant 0 : i32
    %c0_i32_1 = arith.constant 0 : i32
    return %c0_i32, %c0_i32_0 : i32, i32
  }
  func.func @transform_3(%arg0: i32) -> (i32, i32) {
    %c0_i32 = arith.constant 0 : i32
    %c0_i32_0 = arith.constant 0 : i32
    %c0_i32_1 = arith.constant 0 : i32
    return %c0_i32, %c0_i32_0 : i32, i32
  }
  func.func @transform_4(%arg0: i32) -> (i32, i32) {
    %c0_i32 = arith.constant 0 : i32
    %c0_i32_0 = arith.constant 0 : i32
    %c0_i32_1 = arith.constant 0 : i32
    return %c0_i32, %c0_i32_0 : i32, i32
  }
  func.func @transform_5(%arg0: i32) -> (i32, i32) {
    %c0_i32 = arith.constant 0 : i32
    %c0_i32_0 = arith.constant 0 : i32
    %c0_i32_1 = arith.constant 0 : i32
    return %c0_i32, %c0_i32_0 : i32, i32
  }
  func.func @transform_6(%arg0: i32) -> (i32, i32) {
    %c0_i32 = arith.constant 0 : i32
    %c0_i32_0 = arith.constant 0 : i32
    %c0_i32_1 = arith.constant 0 : i32
    return %c0_i32, %c0_i32_0 : i32, i32
  }
  func.func @transform_7(%arg0: i32) -> (i32, i32, i32) {
    %c0_i32 = arith.constant 0 : i32
    %c0_i32_0 = arith.constant 0 : i32
    %c0_i32_1 = arith.constant 0 : i32
    return %arg0, %c0_i32, %c0_i32_0 : i32, i32, i32
  }
}

</mosaic_0001>

<llo_original>
// kernel: tpu_custom_call.1
$region0: #{tpu_custom_call.1}
  #allocation0 [shape = 'u32[]', space=smem, size = 0x4, offset = 0x4, fixed_abs, tag = 'smem constant byte address 0x4 - core index']
  #allocation1 [shape = 'u32[144,128]{1,0:T(1,128)}', space=vmem, size = 0x12000, scoped, tag = 'internal scratch']
  %s0 = inlined_call_operand.vmem [shape: f32[2,8,32], index: 0, kind: input, shape index: {}]
  %s1 = inlined_call_operand.vmem [shape: f32[32,128], index: 1, kind: input, shape index: {}]
  %s2 = inlined_call_operand.vmem [shape: f32[8,64], index: 2, kind: input, shape index: {}]
  %s3 = inlined_call_operand.vmem [shape: f32[64,34], index: 3, kind: input, shape index: {}]
  %s4 = inlined_call_operand.vmem [shape: f32[2,64], index: 4, kind: input, shape index: {}]
  %s5 = inlined_call_operand.vmem [shape: f32[16,64], index: 5, kind: input, shape index: {}]
  %s6 = inlined_call_operand.vmem [shape: f32[64,32], index: 6, kind: input, shape index: {}]
  %s7 = inlined_call_operand.hbm [shape: f32[2,8,32], index: 7, kind: output, shape index: {}]
  %s8 = sld [smem:[#allocation0]]
  $region61: #{tpu_custom_call.1} parent=0
    _
  %s10 = ssub.s32 1, %s8
  %s11 = scalar_select 0, %s10, %s8
  $region1: #{tpu_custom_call.1} parent=0
    #allocation2 [shape = 'u8[8192]{0}', space=vmem, size = 0x2000, scoped, tag = 'output window, operand 0']
    #allocation3 [shape = 's32[2]{0}', space=sflag, size = 0x8, scoped, tag = 'scoped memory for tpu_custom_call.1']
    %12 = vsyncpa [#allocation3], 0
    %s13 = scalar_lea.sflag [#allocation3], 1
    %14 = vsyncpa %s13, 0
    loop: start=0, step=1, limit=4
    $region2: #{tpu_custom_call.1} parent=1 // loop_pre_header
      _
    $region3: #{tpu_custom_call.1} parent=1 // loop_header
      %s16 = sphi 0, %s20
      %p17 = scmp.ge.s32.totalorder %s16, 4
      %s26 = sphi 0, %s28
      %s29 = sphi 0, %s26
      %s30 = sphi 0, %s29
      %s46 = sphi 0, %s30
      %s50 = sphi 0, %s50
      %s52 = sphi 0, %s50
      %s53 = sphi 0, %s52
      %s67 = sphi 0, %s53
      %s71 = sphi 0, %s71
      %s73 = sphi 0, %s71
      %s74 = sphi 0, %s73
      %s88 = sphi 0, %s74
      %s92 = sphi 0, %s92
      %s94 = sphi 0, %s92
      %s95 = sphi 0, %s94
      %s109 = sphi 0, %s95
      %s113 = sphi 0, %s113
      %s115 = sphi 0, %s113
      %s116 = sphi 0, %s115
      %s130 = sphi 0, %s116
      %s134 = sphi 0, %s134
      %s136 = sphi 0, %s134
      %s137 = sphi 0, %s136
      %s151 = sphi 0, %s137
      %s155 = sphi 0, %s155
      %s157 = sphi 0, %s155
      %s158 = sphi 0, %s157
      %s172 = sphi 0, %s158
      %s178 = sphi 0, %s180
      %s181 = sphi 0, %s178
      %s182 = sphi 0, %s181
      %s198 = sphi 0, %s182
    $region4: #{tpu_custom_call.1} parent=1 // loop_header_branch
      %19 = sbr.rel (%p17) target = $region8
    $region5: #{tpu_custom_call.1} parent=1 // loop_body
      %s21 = ssub.s32 %s16, 1
      %s22 = ssub.s32 %s16, 2
      %s23 = sadd.s32 %s16, 1
      %s24 = ssub.s32 %s16, %s23
      %p25 = scmp.eq.s32.totalorder %s24, 0
      %s27 = sadd.s32 %s26, 1
      %s28 = scalar_select %p25, %s26, %s27
      %p31 = pneg %p25
      %p32 = scmp.eq.s32.totalorder %s16, 1
      %p33 = por %p31, %p32
      %p34 = scmp.ne.s32.totalorder %s26, %s29
      %p35 = scmp.eq.s32.totalorder %s16, 0
      %p36 = por %p34, %p35
      %p37 = scmp.ne.s32.totalorder %s26, %s29
      %p38 = scmp.eq.s32.totalorder %s21, 1
      %p39 = por %p37, %p38
      %p40 = scmp.ne.s32.totalorder %s29, %s30
      %p41 = scmp.eq.s32.totalorder %s21, 0
      %p42 = por %p40, %p41
      %p43 = scmp.ne.s32.totalorder %s29, %s30
      %p44 = scmp.eq.s32.totalorder %s22, 1
      %p45 = por %p43, %p44
      %p47 = scmp.ne.s32.totalorder %s30, %s46
      %p48 = scmp.eq.s32.totalorder %s22, 0
      %p49 = por %p47, %p48
      %s51 = sadd.s32 %s50, 1
      %p54 = scmp.eq.s32.totalorder %s16, 1
      %p55 = scmp.ne.s32.totalorder %s50, %s52
      %p56 = scmp.eq.s32.totalorder %s16, 0
      %p57 = por %p55, %p56
      %p58 = scmp.ne.s32.totalorder %s50, %s52
      %p59 = scmp.eq.s32.totalorder %s21, 1
      %p60 = por %p58, %p59
      %p61 = scmp.ne.s32.totalorder %s52, %s53
      %p62 = scmp.eq.s32.totalorder %s21, 0
      %p63 = por %p61, %p62
      %p64 = scmp.ne.s32.totalorder %s52, %s53
      %p65 = scmp.eq.s32.totalorder %s22, 1
      %p66 = por %p64, %p65
      %p68 = scmp.ne.s32.totalorder %s53, %s67
      %p69 = scmp.eq.s32.totalorder %s22, 0
      %p70 = por %p68, %p69
      %s72 = sadd.s32 %s71, 1
      %p75 = scmp.eq.s32.totalorder %s16, 1
      %p76 = scmp.ne.s32.totalorder %s71, %s73
      %p77 = scmp.eq.s32.totalorder %s16, 0
      %p78 = por %p76, %p77
      %p79 = scmp.ne.s32.totalorder %s71, %s73
      %p80 = scmp.eq.s32.totalorder %s21, 1
      %p81 = por %p79, %p80
      %p82 = scmp.ne.s32.totalorder %s73, %s74
      %p83 = scmp.eq.s32.totalorder %s21, 0
      %p84 = por %p82, %p83
      %p85 = scmp.ne.s32.totalorder %s73, %s74
      %p86 = scmp.eq.s32.totalorder %s22, 1
      %p87 = por %p85, %p86
      %p89 = scmp.ne.s32.totalorder %s74, %s88
      %p90 = scmp.eq.s32.totalorder %s22, 0
      %p91 = por %p89, %p90
      %s93 = sadd.s32 %s92, 1
      %p96 = scmp.eq.s32.totalorder %s16, 1
      %p97 = scmp.ne.s32.totalorder %s92, %s94
      %p98 = scmp.eq.s32.totalorder %s16, 0
      %p99 = por %p97, %p98
      %p100 = scmp.ne.s32.totalorder %s92, %s94
      %p101 = scmp.eq.s32.totalorder %s21, 1
      %p102 = por %p100, %p101
      %p103 = scmp.ne.s32.totalorder %s94, %s95
      %p104 = scmp.eq.s32.totalorder %s21, 0
      %p105 = por %p103, %p104
      %p106 = scmp.ne.s32.totalorder %s94, %s95
      %p107 = scmp.eq.s32.totalorder %s22, 1
      %p108 = por %p106, %p107
      %p110 = scmp.ne.s32.totalorder %s95, %s109
      %p111 = scmp.eq.s32.totalorder %s22, 0
      %p112 = por %p110, %p111
      %s114 = sadd.s32 %s113, 1
      %p117 = scmp.eq.s32.totalorder %s16, 1
      %p118 = scmp.ne.s32.totalorder %s113, %s115
      %p119 = scmp.eq.s32.totalorder %s16, 0
      %p120 = por %p118, %p119
      %p121 = scmp.ne.s32.totalorder %s113, %s115
      %p122 = scmp.eq.s32.totalorder %s21, 1
      %p123 = por %p121, %p122
      %p124 = scmp.ne.s32.totalorder %s115, %s116
      %p125 = scmp.eq.s32.totalorder %s21, 0
      %p126 = por %p124, %p125
      %p127 = scmp.ne.s32.totalorder %s115, %s116
      %p128 = scmp.eq.s32.totalorder %s22, 1
      %p129 = por %p127, %p128
      %p131 = scmp.ne.s32.totalorder %s116, %s130
      %p132 = scmp.eq.s32.totalorder %s22, 0
      %p133 = por %p131, %p132
      %s135 = sadd.s32 %s134, 1
      %p138 = scmp.eq.s32.totalorder %s16, 1
      %p139 = scmp.ne.s32.totalorder %s134, %s136
      %p140 = scmp.eq.s32.totalorder %s16, 0
      %p141 = por %p139, %p140
      %p142 = scmp.ne.s32.totalorder %s134, %s136
      %p143 = scmp.eq.s32.totalorder %s21, 1
      %p144 = por %p142, %p143
      %p145 = scmp.ne.s32.totalorder %s136, %s137
      %p146 = scmp.eq.s32.totalorder %s21, 0
      %p147 = por %p145, %p146
      %p148 = scmp.ne.s32.totalorder %s136, %s137
      %p149 = scmp.eq.s32.totalorder %s22, 1
      %p150 = por %p148, %p149
      %p152 = scmp.ne.s32.totalorder %s137, %s151
      %p153 = scmp.eq.s32.totalorder %s22, 0
      %p154 = por %p152, %p153
      %s156 = sadd.s32 %s155, 1
      %p159 = scmp.eq.s32.totalorder %s16, 1
      %p160 = scmp.ne.s32.totalorder %s155, %s157
      %p161 = scmp.eq.s32.totalorder %s16, 0
      %p162 = por %p160, %p161
      %p163 = scmp.ne.s32.totalorder %s155, %s157
      %p164 = scmp.eq.s32.totalorder %s21, 1
      %p165 = por %p163, %p164
      %p166 = scmp.ne.s32.totalorder %s157, %s158
      %p167 = scmp.eq.s32.totalorder %s21, 0
      %p168 = por %p166, %p167
      %p169 = scmp.ne.s32.totalorder %s157, %s158
      %p170 = scmp.eq.s32.totalorder %s22, 1
      %p171 = por %p169, %p170
      %p173 = scmp.ne.s32.totalorder %s158, %s172
      %p174 = scmp.eq.s32.totalorder %s22, 0
      %p175 = por %p173, %p174
      %s176 = ssub.s32 %s16, %s23
      %p177 = scmp.eq.s32.totalorder %s176, 0
      %s179 = sadd.s32 %s178, 1
      %s180 = scalar_select %p177, %s178, %s179
      %p183 = pneg %p177
      %p184 = scmp.eq.s32.totalorder %s16, 1
      %p185 = por %p183, %p184
      %p186 = scmp.ne.s32.totalorder %s178, %s181
      %p187 = scmp.eq.s32.totalorder %s16, 0
      %p188 = por %p186, %p187
      %p189 = scmp.ne.s32.totalorder %s178, %s181
      %p190 = scmp.eq.s32.totalorder %s21, 1
      %p191 = por %p189, %p190
      %p192 = scmp.ne.s32.totalorder %s181, %s182
      %p193 = scmp.eq.s32.totalorder %s21, 0
      %p194 = por %p192, %p193
      %p195 = scmp.ne.s32.totalorder %s181, %s182
      %p196 = scmp.eq.s32.totalorder %s22, 1
      %p197 = por %p195, %p196
      %p199 = scmp.ne.s32.totalorder %s182, %s198
      %p200 = scmp.eq.s32.totalorder %s22, 0
      %p201 = por %p199, %p200
      %p202 = scmp.le.s32.totalorder 1, %s16
      %p203 = scmp.lt.s32.totalorder %s16, 3
      %p204 = pnand %p202, %p203
      %p205 = pneg %p204
      // Predicated region
      $region9: #{tpu_custom_call.1} parent=5 // pred_check
        _
      $region10: #{tpu_custom_call.1} parent=5 // pred_check_branch
        %207 = sbr.rel (%p204) target = $region12
      $region11: #{tpu_custom_call.1} parent=5 // pred_region
        %s208 = ssub.s32 %s16, 1
        // Predicated region
        $region13: #{tpu_custom_call.1} parent=11 // pred_check
          %p209 = pneg %p63
        $region14: #{tpu_custom_call.1} parent=11 // pred_check_branch
          %211 = sbr.rel (%p209) target = $region16
        $region15: #{tpu_custom_call.1} parent=11 // pred_region
          _
        $region16: #{tpu_custom_call.1} parent=11 // pred_fallthru
          _
        // Predicated region
        $region17: #{tpu_custom_call.1} parent=11 // pred_check
          %p212 = pneg %p84
        $region18: #{tpu_custom_call.1} parent=11 // pred_check_branch
          %214 = sbr.rel (%p212) target = $region20
        $region19: #{tpu_custom_call.1} parent=11 // pred_region
          _
        $region20: #{tpu_custom_call.1} parent=11 // pred_fallthru
          _
        // Predicated region
        $region21: #{tpu_custom_call.1} parent=11 // pred_check
          %p215 = pneg %p105
        $region22: #{tpu_custom_call.1} parent=11 // pred_check_branch
          %217 = sbr.rel (%p215) target = $region24
        $region23: #{tpu_custom_call.1} parent=11 // pred_region
          _
        $region24: #{tpu_custom_call.1} parent=11 // pred_fallthru
          _
        // Predicated region
        $region25: #{tpu_custom_call.1} parent=11 // pred_check
          %p218 = pneg %p126
        $region26: #{tpu_custom_call.1} parent=11 // pred_check_branch
          %220 = sbr.rel (%p218) target = $region28
        $region27: #{tpu_custom_call.1} parent=11 // pred_region
          _
        $region28: #{tpu_custom_call.1} parent=11 // pred_fallthru
          _
        // Predicated region
        $region29: #{tpu_custom_call.1} parent=11 // pred_check
          %p221 = pneg %p147
        $region30: #{tpu_custom_call.1} parent=11 // pred_check_branch
          %223 = sbr.rel (%p221) target = $region32
        $region31: #{tpu_custom_call.1} parent=11 // pred_region
          _
        $region32: #{tpu_custom_call.1} parent=11 // pred_fallthru
          _
        // Predicated region
        $region33: #{tpu_custom_call.1} parent=11 // pred_check
          %p224 = pneg %p168
        $region34: #{tpu_custom_call.1} parent=11 // pred_check_branch
          %226 = sbr.rel (%p224) target = $region36
        $region35: #{tpu_custom_call.1} parent=11 // pred_region
          _
        $region36: #{tpu_custom_call.1} parent=11 // pred_fallthru
          _
      $region12: #{tpu_custom_call.1} parent=5 // pred_fallthru
        _
      %p227 = scmp.lt.s32.totalorder %s16, 2
      // Predicated region
      $region37: #{tpu_custom_call.1} parent=5 // pred_check
        %p228 = pneg %p227
      $region38: #{tpu_custom_call.1} parent=5 // pred_check_branch
        %230 = sbr.rel (%p228) target = $region40
      $region39: #{tpu_custom_call.1} parent=5 // pred_region
        // Predicated region
        $region41: #{tpu_custom_call.1} parent=39 // pred_check
          %p231 = pneg %p36
        $region42: #{tpu_custom_call.1} parent=39 // pred_check_branch
          %233 = sbr.rel (%p231) target = $region44
        $region43: #{tpu_custom_call.1} parent=39 // pred_region
          %p234 = scmp.lt.s32.totalorder %s16, 1
          %s235 = scalar_select %p234, %s16, 1
          %s236 = smul.addr %s235, 8
          %s237 = scalar_lea.vmem %s0, %s236
        $region44: #{tpu_custom_call.1} parent=39 // pred_fallthru
          _
      $region40: #{tpu_custom_call.1} parent=5 // pred_fallthru
        _
      %p238 = scmp.le.s32.totalorder 1, %s16
      %p239 = scmp.lt.s32.totalorder %s16, 3
      %p240 = pnand %p238, %p239
      %p241 = pneg %p240
      // Predicated region
      $region45: #{tpu_custom_call.1} parent=5 // pred_check
        _
      $region46: #{tpu_custom_call.1} parent=5 // pred_check_branch
        %243 = sbr.rel (%p240) target = $region48
      $region47: #{tpu_custom_call.1} parent=5 // pred_region
        %s244 = ssub.s32 %s16, 1
        %p245 = scmp.lt.s32.totalorder %s21, 1
        %s246 = scalar_select %p245, %s21, 1
        %s247 = smul.addr %s246, 8
        %s248 = scalar_lea.vmem %s0, %s247
        %p249 = pneg %p42
        %p250 = pneg %p39
        %p251 = pneg %p63
        %p252 = pneg %p60
        %p253 = pneg %p84
        %p254 = pneg %p81
        %p255 = pneg %p105
        %p256 = pneg %p102
        %p257 = pneg %p126
        %p258 = pneg %p123
        %p259 = pneg %p147
        %p260 = pneg %p144
        %p261 = pneg %p168
        %p262 = pneg %p165
        %p263 = pneg %p194
        %p264 = pneg %p191
        %s265 = sand.u32 %s181, 1
        %s266 = scalar_lea.sflag [#allocation3], %s265
        %s267 = sand.u32 %s181, 1
        %s268 = smul.addr %s267, 8
        %s269 = scalar_lea.vmem [#allocation2], %s268
        %p270 = scmp.lt.s32.totalorder %s21, 1
        %s271 = scalar_select %p270, %s21, 1
        %s272 = smul.addr %s271, 8
        %s273 = scalar_lea.vmem %s0, %s272
        %v274 = vld [vmem:[%s273] sm:$0xff]
        %v275 = vld [vmem:[%s1] sm:$0xff]
        %v276 = vld [vmem:[%s1 + $0x8] sm:$0xff]
        %v277 = vld [vmem:[%s1 + $0x10] sm:$0xff]
        %v278 = vld [vmem:[%s1 + $0x18] sm:$0xff]
        %vm279 = vcmask 261120
        %v281 = vsel %vm279, %v274, 0
        %283 = vmatprep.subr.mxu0 0.0
        %284 = vmatpush1.msra.mxu0 %v275
        %285 = vmatprep.subr.mxu0 0.0
        %286 = vmatpush1.msra.mxu0 %v276
        %287 = vmatprep.subr.mxu0 0.0
        %288 = vmatpush1.msra.mxu0 %v277
        %289 = vmatprep.subr.mxu0 0.0
        %290 = vmatpush1.msra.mxu0 %v278
        %291 = vmatprep.subr.mxu0 0.0
        %292 = vmatpush1.msra.mxu0 0.0
        %293 = vmatprep.subr.mxu0 0.0
        %294 = vmatpush1.msra.mxu0 0.0
        %295 = vmatprep.subr.mxu0 0.0
        %296 = vmatpush1.msra.mxu0 0.0
        %297 = vmatprep.subr.mxu0 0.0
        %298 = vmatpush1.msra.mxu0 0.0
        %299 = vmatprep.subr.mxu0 0.0
        %300 = vmatpush1.msra.mxu0 0.0
        %301 = vmatprep.subr.mxu0 0.0
        %302 = vmatpush1.msra.mxu0 0.0
        %303 = vmatprep.subr.mxu0 0.0
        %304 = vmatpush1.msra.mxu0 0.0
        %305 = vmatprep.subr.mxu0 0.0
        %306 = vmatpush1.msra.mxu0 0.0
        %307 = vmatprep.subr.mxu0 0.0
        %308 = vmatpush1.msra.mxu0 0.0
        %309 = vmatprep.subr.mxu0 0.0
        %310 = vmatpush1.msra.mxu0 0.0
        %311 = vmatprep.subr.mxu0 0.0
        %312 = vmatpush1.msra.mxu0 0.0
        %313 = vmatprep.subr.mxu0 0.0
        %314 = vmatpush1.msra.mxu0 0.0
        %315 = vmatprep.subr.mxu0 0.0
        %316 = vmatpush1.msra.mxu0 0.0
        %317 = vmatprep.subr.mxu0 0.0
        %318 = vmatpush1.msra.mxu0 0.0
        %319 = vmatprep.subr.mxu0 0.0
        %320 = vmatpush1.msra.mxu0 0.0
        %321 = vmatprep.subr.mxu0 0.0
        %322 = vmatpush1.msra.mxu0 0.0
        %323 = vmatprep.subr.mxu0 0.0
        %324 = vmatpush1.msra.mxu0 0.0
        %325 = vmatprep.subr.mxu0 0.0
        %326 = vmatpush1.msra.mxu0 0.0
        %327 = vmatprep.subr.mxu0 0.0
        %328 = vmatpush1.msra.mxu0 0.0
        %329 = vmatprep.subr.mxu0 0.0
        %330 = vmatpush1.msra.mxu0 0.0
        %331 = vmatprep.subr.mxu0 0.0
        %332 = vmatpush1.msra.mxu0 0.0
        %333 = vmatprep.subr.mxu0 0.0
        %334 = vmatpush1.msra.mxu0 0.0
        %335 = vmatprep.subr.mxu0 0.0
        %336 = vmatpush1.msra.mxu0 0.0
        %337 = vmatprep.subr.mxu0 0.0
        %338 = vmatpush1.msra.mxu0 0.0
        %339 = vmatprep.subr.mxu0 0.0
        %340 = vmatpush1.msra.mxu0 0.0
        %341 = vmatprep.subr.mxu0 0.0
        %342 = vmatpush1.msra.mxu0 0.0
        %343 = vmatprep.subr.mxu0 0.0
        %344 = vmatpush1.msra.mxu0 0.0
        %345 = vmatprep.subr.mxu0 0.0
        %346 = vmatpush1.msra.mxu0 0.0
        %347 = vmatprep.mubr.f32.mxu0 0.0
        %348 = vmatmul.mubr.f32.gmra.mrb[0].mxu0 %v281
        %v349 = vpop.f32.mrb[0].mxu0
        %v350 = vadd.f32 0.0, %v349
        %v351 = vpop.f32.mrb[0].mxu0
        %352 = vdwg.mxu0
        %v353 = vld [vmem:[%s2] sm:$0xf]
        %v354 = vld [vmem:[%s2 + $0x4] sm:$0x1]
        %v355 = vld [vmem:[%s2 + $0x5] sm:$0x1]
        %v356 = vld [vmem:[%s2 + $0x6] sm:$0x1]
        %v358 = vrot.slane %v350, 5
        %vm360 = vcmask 1042432
        %v361 = vsel %vm360, 0.0, %v358
        %v362 = vlaneseq
        %v363 = vshrl.u32 %v362, 7
        %v364 = vsub.s32 0, %v363
        %v365 = vrot.slane %v353, %v364
        %v366 = vmul.f32 %v361, %v365
        %v367 = vlaneseq
        %v368 = vshrl.u32 %v367, 7
        %v369 = vsub.s32 0, %v368
        %v370 = vrot.slane %v354, %v369
        %v371 = vadd.f32 %v370, %v366
        %v372 = vlaneseq
        %v373 = vshrl.u32 %v372, 7
        %v374 = vsub.s32 1, %v373
        %v375 = vrot.slane %v353, %v374
        %v376 = vmul.f32 %v361, %v375
        %v377 = vmul.f32 %v358, %v375
        %vm380 = vcmask 1046528
        %v381 = vrot.slane %v376, 1
        %v382 = vrot.slane %v377, 1
        %v383 = vsel %vm380, %v381, %v382
        %v385 = vadd.f32 %v371, %v383
        %v386 = vlaneseq
        %v387 = vshrl.u32 %v386, 7
        %v388 = vsub.s32 2, %v387
        %v389 = vrot.slane %v353, %v388
        %v390 = vmul.f32 %v361, %v389
        %v391 = vmul.f32 %v358, %v389
        %vm394 = vcmask 1045504
        %v395 = vrot.slane %v390, 2
        %v396 = vrot.slane %v391, 2
        %v397 = vsel %vm394, %v395, %v396
        %v399 = vadd.f32 %v385, %v397
        %v400 = vlaneseq
        %v401 = vshrl.u32 %v400, 7
        %v402 = vsub.s32 3, %v401
        %v403 = vrot.slane %v353, %v402
        %v404 = vmul.f32 %v361, %v403
        %v405 = vmul.f32 %v358, %v403
        %vm408 = vcmask 1044480
        %v409 = vrot.slane %v404, 3
        %v410 = vrot.slane %v405, 3
        %v411 = vsel %vm408, %v409, %v410
        %v413 = vadd.f32 %v399, %v411
        %v414 = vsub.f32 0.0, %v413
        %v415 = vmul.f32 %v414, 1.442695
        %v416 = vpow.pop %v415
        %v417 = vadd.f32 %v416, 1.0
        %v418 = vrcp.pop %v417
        %v419 = vmul.f32 1.0, %v418
        %v420 = vmul.f32 %v413, %v419
        %v421 = vld [vmem:[%s3] sm:$0xff]
        %v422 = vld [vmem:[%s3 + $0x8] sm:$0xff]
        %v423 = vld [vmem:[%s3 + $0x10] sm:$0xff]
        %v424 = vld [vmem:[%s3 + $0x18] sm:$0xff]
        %v425 = vld [vmem:[%s3 + $0x20] sm:$0xff]
        %v426 = vld [vmem:[%s3 + $0x28] sm:$0xff]
        %v427 = vld [vmem:[%s3 + $0x30] sm:$0xff]
        %v428 = vld [vmem:[%s3 + $0x38] sm:$0xff]
        %vm429 = vcmask 523264
        %v431 = vsel %vm429, %v420, 0
        %433 = vmatprep.subr.mxu0 0.0
        %434 = vmatpush1.msra.mxu0 %v421
        %435 = vmatprep.subr.mxu0 0.0
        %436 = vmatpush1.msra.mxu0 %v422
        %437 = vmatprep.subr.mxu0 0.0
        %438 = vmatpush1.msra.mxu0 %v423
        %439 = vmatprep.subr.mxu0 0.0
        %440 = vmatpush1.msra.mxu0 %v424
        %441 = vmatprep.subr.mxu0 0.0
        %442 = vmatpush1.msra.mxu0 %v425
        %443 = vmatprep.subr.mxu0 0.0
        %444 = vmatpush1.msra.mxu0 %v426
        %445 = vmatprep.subr.mxu0 0.0
        %446 = vmatpush1.msra.mxu0 %v427
        %447 = vmatprep.subr.mxu0 0.0
        %448 = vmatpush1.msra.mxu0 %v428
        %449 = vmatprep.subr.mxu0 0.0
        %450 = vmatpush1.msra.mxu0 0.0
        %451 = vmatprep.subr.mxu0 0.0
        %452 = vmatpush1.msra.mxu0 0.0
        %453 = vmatprep.subr.mxu0 0.0
        %454 = vmatpush1.msra.mxu0 0.0
        %455 = vmatprep.subr.mxu0 0.0
        %456 = vmatpush1.msra.mxu0 0.0
        %457 = vmatprep.subr.mxu0 0.0
        %458 = vmatpush1.msra.mxu0 0.0
        %459 = vmatprep.subr.mxu0 0.0
        %460 = vmatpush1.msra.mxu0 0.0
        %461 = vmatprep.subr.mxu0 0.0
        %462 = vmatpush1.msra.mxu0 0.0
        %463 = vmatprep.subr.mxu0 0.0
        %464 = vmatpush1.msra.mxu0 0.0
        %465 = vmatprep.subr.mxu0 0.0
        %466 = vmatpush1.msra.mxu0 0.0
        %467 = vmatprep.subr.mxu0 0.0
        %468 = vmatpush1.msra.mxu0 0.0
        %469 = vmatprep.subr.mxu0 0.0
        %470 = vmatpush1.msra.mxu0 0.0
        %471 = vmatprep.subr.mxu0 0.0
        %472 = vmatpush1.msra.mxu0 0.0
        %473 = vmatprep.subr.mxu0 0.0
        %474 = vmatpush1.msra.mxu0 0.0
        %475 = vmatprep.subr.mxu0 0.0
        %476 = vmatpush1.msra.mxu0 0.0
        %477 = vmatprep.subr.mxu0 0.0
        %478 = vmatpush1.msra.mxu0 0.0
        %479 = vmatprep.subr.mxu0 0.0
        %480 = vmatpush1.msra.mxu0 0.0
        %481 = vmatprep.subr.mxu0 0.0
        %482 = vmatpush1.msra.mxu0 0.0
        %483 = vmatprep.subr.mxu0 0.0
        %484 = vmatpush1.msra.mxu0 0.0
        %485 = vmatprep.subr.mxu0 0.0
        %486 = vmatpush1.msra.mxu0 0.0
        %487 = vmatprep.subr.mxu0 0.0
        %488 = vmatpush1.msra.mxu0 0.0
        %489 = vmatprep.subr.mxu0 0.0
        %490 = vmatpush1.msra.mxu0 0.0
        %491 = vmatprep.subr.mxu0 0.0
        %492 = vmatpush1.msra.mxu0 0.0
        %493 = vmatprep.subr.mxu0 0.0
        %494 = vmatpush1.msra.mxu0 0.0
        %495 = vmatprep.subr.mxu0 0.0
        %496 = vmatpush1.msra.mxu0 0.0
        %497 = vmatprep.mubr.f32.mxu0 0.0
        %498 = vmatmul.mubr.f32.gmra.mrb[0].mxu0 %v431
        %v499 = vpop.f32.mrb[0].mxu0
        %v500 = vadd.f32 0.0, %v499
        %v501 = vpop.f32.mrb[0].mxu0
        %502 = vdwg.mxu0
        %v503 = vld [vmem:[%s4] sm:$0x3]
        %v504 = vlaneseq
        %v505 = vshrl.u32 %v504, 7
        %v506 = vsub.s32 0, %v505
        %v507 = vrot.slane %v355, %v506
        %vm508 = vcmask 15360
        %v510 = vsel %vm508, %v500, 0
        %vm512 = vcmask 1041408
        %v514 = vsel %vm512, %v503, 0
        %516 = vmatprep.subr.mxu0 0.0
        %517 = vmatpush1.msra.mxu0 %v514
        %518 = vmatprep.subr.mxu0 0.0
        %519 = vmatpush1.msra.mxu0 0.0
        %520 = vmatprep.subr.mxu0 0.0
        %521 = vmatpush1.msra.mxu0 0.0
        %522 = vmatprep.subr.mxu0 0.0
        %523 = vmatpush1.msra.mxu0 0.0
        %524 = vmatprep.subr.mxu0 0.0
        %525 = vmatpush1.msra.mxu0 0.0
        %526 = vmatprep.subr.mxu0 0.0
        %527 = vmatpush1.msra.mxu0 0.0
        %528 = vmatprep.subr.mxu0 0.0
        %529 = vmatpush1.msra.mxu0 0.0
        %530 = vmatprep.subr.mxu0 0.0
        %531 = vmatpush1.msra.mxu0 0.0
        %532 = vmatprep.subr.mxu0 0.0
        %533 = vmatpush1.msra.mxu0 0.0
        %534 = vmatprep.subr.mxu0 0.0
        %535 = vmatpush1.msra.mxu0 0.0
        %536 = vmatprep.subr.mxu0 0.0
        %537 = vmatpush1.msra.mxu0 0.0
        %538 = vmatprep.subr.mxu0 0.0
        %539 = vmatpush1.msra.mxu0 0.0
        %540 = vmatprep.subr.mxu0 0.0
        %541 = vmatpush1.msra.mxu0 0.0
        %542 = vmatprep.subr.mxu0 0.0
        %543 = vmatpush1.msra.mxu0 0.0
        %544 = vmatprep.subr.mxu0 0.0
        %545 = vmatpush1.msra.mxu0 0.0
        %546 = vmatprep.subr.mxu0 0.0
        %547 = vmatpush1.msra.mxu0 0.0
        %548 = vmatprep.subr.mxu0 0.0
        %549 = vmatpush1.msra.mxu0 0.0
        %550 = vmatprep.subr.mxu0 0.0
        %551 = vmatpush1.msra.mxu0 0.0
        %552 = vmatprep.subr.mxu0 0.0
        %553 = vmatpush1.msra.mxu0 0.0
        %554 = vmatprep.subr.mxu0 0.0
        %555 = vmatpush1.msra.mxu0 0.0
        %556 = vmatprep.subr.mxu0 0.0
        %557 = vmatpush1.msra.mxu0 0.0
        %558 = vmatprep.subr.mxu0 0.0
        %559 = vmatpush1.msra.mxu0 0.0
        %560 = vmatprep.subr.mxu0 0.0
        %561 = vmatpush1.msra.mxu0 0.0
        %562 = vmatprep.subr.mxu0 0.0
        %563 = vmatpush1.msra.mxu0 0.0
        %564 = vmatprep.subr.mxu0 0.0
        %565 = vmatpush1.msra.mxu0 0.0
        %566 = vmatprep.subr.mxu0 0.0
        %567 = vmatpush1.msra.mxu0 0.0
        %568 = vmatprep.subr.mxu0 0.0
        %569 = vmatpush1.msra.mxu0 0.0
        %570 = vmatprep.subr.mxu0 0.0
        %571 = vmatpush1.msra.mxu0 0.0
        %572 = vmatprep.subr.mxu0 0.0
        %573 = vmatpush1.msra.mxu0 0.0
        %574 = vmatprep.subr.mxu0 0.0
        %575 = vmatpush1.msra.mxu0 0.0
        %576 = vmatprep.subr.mxu0 0.0
        %577 = vmatpush1.msra.mxu0 0.0
        %578 = vmatprep.subr.mxu0 0.0
        %579 = vmatpush1.msra.mxu0 0.0
        %580 = vmatprep.mubr.f32.mxu0 0.0
        %581 = vmatmul.mubr.f32.gmra.mrb[0].mxu0 %v510
        %v582 = vpop.f32.mrb[0].mxu0
        %v583 = vadd.f32 %v507, %v582
        %v584 = vpop.f32.mrb[0].mxu0
        %585 = vdwg.mxu0
        %vm586 = vcmp.gt.f32.partialorder %v583, 20.0
        %v587 = vmin.f32 %v583, 20.0
        %v588 = vmul.f32 %v587, 1.442695
        %v589 = vpow.pop %v588
        %v590 = vadd.f32 %v589, 1.0
        %v591 = vlog2.pop %v590
        %v592 = vmul.f32 %v591, 0.6931472
        %v593 = vmul.f32 -0.5, %v589
        %v594 = vadd.f32 %v593, 1.0
        %v595 = vmul.f32 %v594, %v589
        %v596 = vand.u32 2147483647, %v589
        %vm597 = vcmp.lt.f32.partialorder %v596, 0.0004427343
        %v598 = vsel %vm597, %v595, %v592
        %v599 = vsel %vm586, %v583, %v598
        %v600 = vld [vmem:[%s5] sm:$0xff]
        %v601 = vld [vmem:[%s5 + $0x8] sm:$0xff]
        %v602 = vmul.f32 %v600, 1.442695
        %v603 = vpow.pop %v602
        %v604 = vmul.f32 %v601, 1.442695
        %v605 = vpow.pop %v604
        %v606 = vsub.f32 0.0, %v603
        %v607 = vsub.f32 0.0, %v605
        %v608 = vmul.f32 %v599, %v420
        %v610 = vcombine.high %v599, %v599
        %v612 = vunpack.c.l.s4 1966171168
        %v613 = vunpack.c.0.s8 %v612
        %v614 = vlaneseq
        %v615 = vshrl.u32 %v614, 7
        %v616 = vsub.s32 %v613, %v615
        %v617 = vrot.slane %v599, %v616
        %v619 = vunpack.c.l.s4 1966171168
        %v620 = vunpack.c.0.s8 %v619
        %v621 = vlaneseq
        %v622 = vshrl.u32 %v621, 7
        %v623 = vsub.s32 %v620, %v622
        %v624 = vrot.slane %v610, %v623
        %v625 = vcombine.high %v617, %v617
        %v626 = vcombine.high %v624, %v624
        %v628 = vunpack.c.l.s4 1966171168
        %v629 = vunpack.c.0.s8 %v628
        %v630 = vlaneseq
        %v631 = vshrl.u32 %v630, 7
        %v632 = vsub.s32 %v629, %v631
        %v633 = vrot.slane %v617, %v632
        %v635 = vunpack.c.l.s4 1966171168
        %v636 = vunpack.c.0.s8 %v635
        %v637 = vlaneseq
        %v638 = vshrl.u32 %v637, 7
        %v639 = vsub.s32 %v636, %v638
        %v640 = vrot.slane %v624, %v639
        %v642 = vunpack.c.l.s4 1966171168
        %v643 = vunpack.c.0.s8 %v642
        %v644 = vlaneseq
        %v645 = vshrl.u32 %v644, 7
        %v646 = vsub.s32 %v643, %v645
        %v647 = vrot.slane %v625, %v646
        %v649 = vunpack.c.l.s4 1966171168
        %v650 = vunpack.c.0.s8 %v649
        %v651 = vlaneseq
        %v652 = vshrl.u32 %v651, 7
        %v653 = vsub.s32 %v650, %v652
        %v654 = vrot.slane %v626, %v653
        %v655 = vcombine.high %v633, %v633
        %v656 = vcombine.high %v640, %v640
        %v657 = vcombine.high %v647, %v647
        %v658 = vcombine.high %v654, %v654
        %v659 = vlaneseq
        %v660 = vshrl.u32 %v659, 7
        %v661 = vsub.s32 0, %v660
        %v662 = vrot.slane %v633, %v661
        %v663 = vlaneseq
        %v664 = vshrl.u32 %v663, 7
        %v665 = vsub.s32 0, %v664
        %v666 = vrot.slane %v647, %v665
        %v667 = vlaneseq
        %v668 = vshrl.u32 %v667, 7
        %v669 = vsub.s32 0, %v668
        %v670 = vrot.slane %v655, %v669
        %v671 = vlaneseq
        %v672 = vshrl.u32 %v671, 7
        %v673 = vsub.s32 0, %v672
        %v674 = vrot.slane %v657, %v673
        %v675 = vlaneseq
        %v676 = vshrl.u32 %v675, 7
        %v677 = vsub.s32 0, %v676
        %v678 = vrot.slane %v640, %v677
        %v679 = vlaneseq
        %v680 = vshrl.u32 %v679, 7
        %v681 = vsub.s32 0, %v680
        %v682 = vrot.slane %v654, %v681
        %v683 = vlaneseq
        %v684 = vshrl.u32 %v683, 7
        %v685 = vsub.s32 0, %v684
        %v686 = vrot.slane %v656, %v685
        %v687 = vlaneseq
        %v688 = vshrl.u32 %v687, 7
        %v689 = vsub.s32 0, %v688
        %v690 = vrot.slane %v658, %v689
        %v699 = vmul.f32 %v662, %v606
        %v700 = vmul.f32 %v662, %v607
        %v701 = vmul.f32 %v666, %v606
        %v702 = vmul.f32 %v666, %v607
        %v703 = vmul.f32 %v670, %v606
        %v704 = vmul.f32 %v670, %v607
        %v705 = vmul.f32 %v674, %v606
        %v706 = vmul.f32 %v674, %v607
        %v707 = vmul.f32 %v678, %v606
        %v708 = vmul.f32 %v678, %v607
        %v709 = vmul.f32 %v682, %v606
        %v710 = vmul.f32 %v682, %v607
        %v711 = vmul.f32 %v686, %v606
        %v712 = vmul.f32 %v686, %v607
        %v713 = vmul.f32 %v690, %v606
        %v714 = vmul.f32 %v690, %v607
        %v715 = vmul.f32 %v699, 1.442695
        %v716 = vpow.pop %v715
        %v717 = vmul.f32 %v700, 1.442695
        %v718 = vpow.pop %v717
        %v719 = vmul.f32 %v701, 1.442695
        %v720 = vpow.pop %v719
        %v721 = vmul.f32 %v702, 1.442695
        %v722 = vpow.pop %v721
        %v723 = vmul.f32 %v703, 1.442695
        %v724 = vpow.pop %v723
        %v725 = vmul.f32 %v704, 1.442695
        %v726 = vpow.pop %v725
        %v727 = vmul.f32 %v705, 1.442695
        %v728 = vpow.pop %v727
        %v729 = vmul.f32 %v706, 1.442695
        %v730 = vpow.pop %v729
        %v731 = vmul.f32 %v707, 1.442695
        %v732 = vpow.pop %v731
        %v733 = vmul.f32 %v708, 1.442695
        %v734 = vpow.pop %v733
        %v735 = vmul.f32 %v709, 1.442695
        %v736 = vpow.pop %v735
        %v737 = vmul.f32 %v710, 1.442695
        %v738 = vpow.pop %v737
        %v739 = vmul.f32 %v711, 1.442695
        %v740 = vpow.pop %v739
        %v741 = vmul.f32 %v712, 1.442695
        %v742 = vpow.pop %v741
        %v743 = vmul.f32 %v713, 1.442695
        %v744 = vpow.pop %v743
        %v745 = vmul.f32 %v714, 1.442695
        %v746 = vpow.pop %v745
        %v747 = vlaneseq
        %v748 = vshrl.u32 %v747, 7
        %v749 = vsub.s32 0, %v748
        %v750 = vrot.slane %v500, %v749
        %s752 = sor.u32 256, 2
        %753 = vbcast.lane.b32.xlu0 %v750, %s752
        %v754 = vpop.permute.xlu0 %753
        %s756 = sor.u32 256, 10
        %757 = vbcast.lane.b32.xlu0 %v750, %s756
        %v758 = vpop.permute.xlu0 %757
        %v759 = vlaneseq
        %v760 = vshrl.u32 %v759, 7
        %v761 = vsub.s32 1, %v760
        %v762 = vrot.slane %v500, %v761
        %s764 = sor.u32 256, 2
        %765 = vbcast.lane.b32.xlu0 %v762, %s764
        %v766 = vpop.permute.xlu0 %765
        %s768 = sor.u32 256, 10
        %769 = vbcast.lane.b32.xlu0 %v762, %s768
        %v770 = vpop.permute.xlu0 %769
        %v771 = vlaneseq
        %v772 = vshrl.u32 %v771, 7
        %v773 = vsub.s32 2, %v772
        %v774 = vrot.slane %v500, %v773
        %s776 = sor.u32 256, 2
        %777 = vbcast.lane.b32.xlu0 %v774, %s776
        %v778 = vpop.permute.xlu0 %777
        %s780 = sor.u32 256, 10
        %781 = vbcast.lane.b32.xlu0 %v774, %s780
        %v782 = vpop.permute.xlu0 %781
        %v783 = vlaneseq
        %v784 = vshrl.u32 %v783, 7
        %v785 = vsub.s32 3, %v784
        %v786 = vrot.slane %v500, %v785
        %s788 = sor.u32 256, 2
        %789 = vbcast.lane.b32.xlu0 %v786, %s788
        %v790 = vpop.permute.xlu0 %789
        %s792 = sor.u32 256, 10
        %793 = vbcast.lane.b32.xlu0 %v786, %s792
        %v794 = vpop.permute.xlu0 %793
        %v795 = vlaneseq
        %v796 = vshrl.u32 %v795, 7
        %v797 = vsub.s32 4, %v796
        %v798 = vrot.slane %v500, %v797
        %s800 = sor.u32 256, 2
        %801 = vbcast.lane.b32.xlu0 %v798, %s800
        %v802 = vpop.permute.xlu0 %801
        %s804 = sor.u32 256, 10
        %805 = vbcast.lane.b32.xlu0 %v798, %s804
        %v806 = vpop.permute.xlu0 %805
        %v807 = vlaneseq
        %v808 = vshrl.u32 %v807, 7
        %v809 = vsub.s32 5, %v808
        %v810 = vrot.slane %v500, %v809
        %s812 = sor.u32 256, 2
        %813 = vbcast.lane.b32.xlu0 %v810, %s812
        %v814 = vpop.permute.xlu0 %813
        %s816 = sor.u32 256, 10
        %817 = vbcast.lane.b32.xlu0 %v810, %s816
        %v818 = vpop.permute.xlu0 %817
        %v819 = vlaneseq
        %v820 = vshrl.u32 %v819, 7
        %v821 = vsub.s32 6, %v820
        %v822 = vrot.slane %v500, %v821
        %s824 = sor.u32 256, 2
        %825 = vbcast.lane.b32.xlu0 %v822, %s824
        %v826 = vpop.permute.xlu0 %825
        %s828 = sor.u32 256, 10
        %829 = vbcast.lane.b32.xlu0 %v822, %s828
        %v830 = vpop.permute.xlu0 %829
        %v831 = vlaneseq
        %v832 = vshrl.u32 %v831, 7
        %v833 = vsub.s32 7, %v832
        %v834 = vrot.slane %v500, %v833
        %s836 = sor.u32 256, 2
        %837 = vbcast.lane.b32.xlu0 %v834, %s836
        %v838 = vpop.permute.xlu0 %837
        %s840 = sor.u32 256, 10
        %841 = vbcast.lane.b32.xlu0 %v834, %s840
        %v842 = vpop.permute.xlu0 %841
        %v844 = vcombine.high %v608, %v608
        %v846 = vunpack.c.l.s4 1966171168
        %v847 = vunpack.c.0.s8 %v846
        %v848 = vlaneseq
        %v849 = vshrl.u32 %v848, 7
        %v850 = vsub.s32 %v847, %v849
        %v851 = vrot.slane %v608, %v850
        %v853 = vunpack.c.l.s4 1966171168
        %v854 = vunpack.c.0.s8 %v853
        %v855 = vlaneseq
        %v856 = vshrl.u32 %v855, 7
        %v857 = vsub.s32 %v854, %v856
        %v858 = vrot.slane %v844, %v857
        %v859 = vcombine.high %v851, %v851
        %v860 = vcombine.high %v858, %v858
        %v862 = vunpack.c.l.s4 1966171168
        %v863 = vunpack.c.0.s8 %v862
        %v864 = vlaneseq
        %v865 = vshrl.u32 %v864, 7
        %v866 = vsub.s32 %v863, %v865
        %v867 = vrot.slane %v851, %v866
        %v869 = vunpack.c.l.s4 1966171168
        %v870 = vunpack.c.0.s8 %v869
        %v871 = vlaneseq
        %v872 = vshrl.u32 %v871, 7
        %v873 = vsub.s32 %v870, %v872
        %v874 = vrot.slane %v858, %v873
        %v876 = vunpack.c.l.s4 1966171168
        %v877 = vunpack.c.0.s8 %v876
        %v878 = vlaneseq
        %v879 = vshrl.u32 %v878, 7
        %v880 = vsub.s32 %v877, %v879
        %v881 = vrot.slane %v859, %v880
        %v883 = vunpack.c.l.s4 1966171168
        %v884 = vunpack.c.0.s8 %v883
        %v885 = vlaneseq
        %v886 = vshrl.u32 %v885, 7
        %v887 = vsub.s32 %v884, %v886
        %v888 = vrot.slane %v860, %v887
        %v889 = vcombine.high %v867, %v867
        %v890 = vcombine.high %v874, %v874
        %v891 = vcombine.high %v881, %v881
        %v892 = vcombine.high %v888, %v888
        %v893 = vlaneseq
        %v894 = vshrl.u32 %v893, 7
        %v895 = vsub.s32 0, %v894
        %v896 = vrot.slane %v867, %v895
        %v897 = vlaneseq
        %v898 = vshrl.u32 %v897, 7
        %v899 = vsub.s32 0, %v898
        %v900 = vrot.slane %v881, %v899
        %v901 = vlaneseq
        %v902 = vshrl.u32 %v901, 7
        %v903 = vsub.s32 0, %v902
        %v904 = vrot.slane %v889, %v903
        %v905 = vlaneseq
        %v906 = vshrl.u32 %v905, 7
        %v907 = vsub.s32 0, %v906
        %v908 = vrot.slane %v891, %v907
        %v909 = vlaneseq
        %v910 = vshrl.u32 %v909, 7
        %v911 = vsub.s32 0, %v910
        %v912 = vrot.slane %v874, %v911
        %v913 = vlaneseq
        %v914 = vshrl.u32 %v913, 7
        %v915 = vsub.s32 0, %v914
        %v916 = vrot.slane %v888, %v915
        %v917 = vlaneseq
        %v918 = vshrl.u32 %v917, 7
        %v919 = vsub.s32 0, %v918
        %v920 = vrot.slane %v890, %v919
        %v921 = vlaneseq
        %v922 = vshrl.u32 %v921, 7
        %v923 = vsub.s32 0, %v922
        %v924 = vrot.slane %v892, %v923
        %v933 = vmul.f32 %v754, %v896
        %v934 = vmul.f32 %v758, %v896
        %v935 = vmul.f32 %v766, %v900
        %v936 = vmul.f32 %v770, %v900
        %v937 = vmul.f32 %v778, %v904
        %v938 = vmul.f32 %v782, %v904
        %v939 = vmul.f32 %v790, %v908
        %v940 = vmul.f32 %v794, %v908
        %v941 = vmul.f32 %v802, %v912
        %v942 = vmul.f32 %v806, %v912
        %v943 = vmul.f32 %v814, %v916
        %v944 = vmul.f32 %v818, %v916
        %v945 = vmul.f32 %v826, %v920
        %v946 = vmul.f32 %v830, %v920
        %v947 = vmul.f32 %v838, %v924
        %v948 = vmul.f32 %v842, %v924
        %v949 = vmul.f32 %v716, 0.0
        %v950 = vmul.f32 %v718, 0.0
        %v951 = vadd.f32 %v949, %v933
        %v952 = vadd.f32 %v950, %v934
        %v953 = vmul.f32 %v720, %v951
        %v954 = vmul.f32 %v722, %v952
        %v955 = vadd.f32 %v953, %v935
        %v956 = vadd.f32 %v954, %v936
        %v957 = vmul.f32 %v724, %v955
        %v958 = vmul.f32 %v726, %v956
        %v959 = vadd.f32 %v957, %v937
        %v960 = vadd.f32 %v958, %v938
        %v961 = vmul.f32 %v728, %v959
        %v962 = vmul.f32 %v730, %v960
        %v963 = vadd.f32 %v961, %v939
        %v964 = vadd.f32 %v962, %v940
        %v965 = vmul.f32 %v732, %v963
        %v966 = vmul.f32 %v734, %v964
        %v967 = vadd.f32 %v965, %v941
        %v968 = vadd.f32 %v966, %v942
        %v969 = vmul.f32 %v736, %v967
        %v970 = vmul.f32 %v738, %v968
        %v971 = vadd.f32 %v969, %v943
        %v972 = vadd.f32 %v970, %v944
        %v973 = vmul.f32 %v740, %v971
        %v974 = vmul.f32 %v742, %v972
        %v975 = vadd.f32 %v973, %v945
        %v976 = vadd.f32 %v974, %v946
        %v977 = vmul.f32 %v744, %v975
        %v978 = vmul.f32 %v746, %v976
        %v979 = vadd.f32 %v977, %v947
        %v980 = vadd.f32 %v978, %v948
        %s982 = sor.u32 256, 18
        %983 = vbcast.lane.b32.xlu0 %v750, %s982
        %v984 = vpop.permute.xlu0 %983
        %s986 = sor.u32 256, 26
        %987 = vbcast.lane.b32.xlu0 %v750, %s986
        %v988 = vpop.permute.xlu0 %987
        %s990 = sor.u32 256, 18
        %991 = vbcast.lane.b32.xlu0 %v762, %s990
        %v992 = vpop.permute.xlu0 %991
        %s994 = sor.u32 256, 26
        %995 = vbcast.lane.b32.xlu0 %v762, %s994
        %v996 = vpop.permute.xlu0 %995
        %s998 = sor.u32 256, 18
        %999 = vbcast.lane.b32.xlu0 %v774, %s998
        %v1000 = vpop.permute.xlu0 %999
        %s1002 = sor.u32 256, 26
        %1003 = vbcast.lane.b32.xlu0 %v774, %s1002
        %v1004 = vpop.permute.xlu0 %1003
        %s1006 = sor.u32 256, 18
        %1007 = vbcast.lane.b32.xlu0 %v786, %s1006
        %v1008 = vpop.permute.xlu0 %1007
        %s1010 = sor.u32 256, 26
        %1011 = vbcast.lane.b32.xlu0 %v786, %s1010
        %v1012 = vpop.permute.xlu0 %1011
        %s1014 = sor.u32 256, 18
        %1015 = vbcast.lane.b32.xlu0 %v798, %s1014
        %v1016 = vpop.permute.xlu0 %1015
        %s1018 = sor.u32 256, 26
        %1019 = vbcast.lane.b32.xlu0 %v798, %s1018
        %v1020 = vpop.permute.xlu0 %1019
        %s1022 = sor.u32 256, 18
        %1023 = vbcast.lane.b32.xlu0 %v810, %s1022
        %v1024 = vpop.permute.xlu0 %1023
        %s1026 = sor.u32 256, 26
        %1027 = vbcast.lane.b32.xlu0 %v810, %s1026
        %v1028 = vpop.permute.xlu0 %1027
        %s1030 = sor.u32 256, 18
        %1031 = vbcast.lane.b32.xlu0 %v822, %s1030
        %v1032 = vpop.permute.xlu0 %1031
        %s1034 = sor.u32 256, 26
        %1035 = vbcast.lane.b32.xlu0 %v822, %s1034
        %v1036 = vpop.permute.xlu0 %1035
        %s1038 = sor.u32 256, 18
        %1039 = vbcast.lane.b32.xlu0 %v834, %s1038
        %v1040 = vpop.permute.xlu0 %1039
        %s1042 = sor.u32 256, 26
        %1043 = vbcast.lane.b32.xlu0 %v834, %s1042
        %v1044 = vpop.permute.xlu0 %1043
        %v1045 = vmul.f32 %v984, %v951
        %v1046 = vmul.f32 %v988, %v952
        %v1047 = vmul.f32 %v992, %v955
        %v1048 = vmul.f32 %v996, %v956
        %v1049 = vmul.f32 %v1000, %v959
        %v1050 = vmul.f32 %v1004, %v960
        %v1051 = vmul.f32 %v1008, %v963
        %v1052 = vmul.f32 %v1012, %v964
        %v1053 = vmul.f32 %v1016, %v967
        %v1054 = vmul.f32 %v1020, %v968
        %v1055 = vmul.f32 %v1024, %v971
        %v1056 = vmul.f32 %v1028, %v972
        %v1057 = vmul.f32 %v1032, %v975
        %v1058 = vmul.f32 %v1036, %v976
        %v1059 = vmul.f32 %v1040, %v979
        %v1060 = vmul.f32 %v1044, %v980
        %v1061 = vsel %vm429, %v1045, 0.0
        %v1062 = vsel %vm429, %v1046, 0.0
        %v1063 = vadd.f32 %v1061, %v1062
        %v1064 = vrot.slane %v1063, 4
        %v1065 = vadd.f32 %v1063, %v1064
        %v1066 = vrot.slane %v1065, 2
        %v1067 = vadd.f32 %v1065, %v1066
        %v1068 = vrot.slane %v1067, 1
        %v1069 = vadd.f32 %v1067, %v1068
        %v1070 = vsel %vm429, %v1047, 0.0
        %v1071 = vsel %vm429, %v1048, 0.0
        %v1072 = vadd.f32 %v1070, %v1071
        %v1073 = vrot.slane %v1072, 4
        %v1074 = vadd.f32 %v1072, %v1073
        %v1075 = vrot.slane %v1074, 2
        %v1076 = vadd.f32 %v1074, %v1075
        %v1077 = vrot.slane %v1076, 1
        %v1078 = vadd.f32 %v1076, %v1077
        %v1079 = vsel %vm429, %v1049, 0.0
        %v1080 = vsel %vm429, %v1050, 0.0
        %v1081 = vadd.f32 %v1079, %v1080
        %v1082 = vrot.slane %v1081, 4
        %v1083 = vadd.f32 %v1081, %v1082
        %v1084 = vrot.slane %v1083, 2
        %v1085 = vadd.f32 %v1083, %v1084
        %v1086 = vrot.slane %v1085, 1
        %v1087 = vadd.f32 %v1085, %v1086
        %v1088 = vsel %vm429, %v1051, 0.0
        %v1089 = vsel %vm429, %v1052, 0.0
        %v1090 = vadd.f32 %v1088, %v1089
        %v1091 = vrot.slane %v1090, 4
        %v1092 = vadd.f32 %v1090, %v1091
        %v1093 = vrot.slane %v1092, 2
        %v1094 = vadd.f32 %v1092, %v1093
        %v1095 = vrot.slane %v1094, 1
        %v1096 = vadd.f32 %v1094, %v1095
        %v1097 = vsel %vm429, %v1053, 0.0
        %v1098 = vsel %vm429, %v1054, 0.0
        %v1099 = vadd.f32 %v1097, %v1098
        %v1100 = vrot.slane %v1099, 4
        %v1101 = vadd.f32 %v1099, %v1100
        %v1102 = vrot.slane %v1101, 2
        %v1103 = vadd.f32 %v1101, %v1102
        %v1104 = vrot.slane %v1103, 1
        %v1105 = vadd.f32 %v1103, %v1104
        %v1106 = vsel %vm429, %v1055, 0.0
        %v1107 = vsel %vm429, %v1056, 0.0
        %v1108 = vadd.f32 %v1106, %v1107
        %v1109 = vrot.slane %v1108, 4
        %v1110 = vadd.f32 %v1108, %v1109
        %v1111 = vrot.slane %v1110, 2
        %v1112 = vadd.f32 %v1110, %v1111
        %v1113 = vrot.slane %v1112, 1
        %v1114 = vadd.f32 %v1112, %v1113
        %v1115 = vsel %vm429, %v1057, 0.0
        %v1116 = vsel %vm429, %v1058, 0.0
        %v1117 = vadd.f32 %v1115, %v1116
        %v1118 = vrot.slane %v1117, 4
        %v1119 = vadd.f32 %v1117, %v1118
        %v1120 = vrot.slane %v1119, 2
        %v1121 = vadd.f32 %v1119, %v1120
        %v1122 = vrot.slane %v1121, 1
        %v1123 = vadd.f32 %v1121, %v1122
        %v1124 = vsel %vm429, %v1059, 0.0
        %v1125 = vsel %vm429, %v1060, 0.0
        %v1126 = vadd.f32 %v1124, %v1125
        %v1127 = vrot.slane %v1126, 4
        %v1128 = vadd.f32 %v1126, %v1127
        %v1129 = vrot.slane %v1128, 2
        %v1130 = vadd.f32 %v1128, %v1129
        %v1131 = vrot.slane %v1130, 1
        %v1132 = vadd.f32 %v1130, %v1131
        %v1133 = vlaneseq
        %v1134 = vshrl.u32 %v1133, 7
        %v1135 = vsub.s32 0, %v1134
        %v1136 = vrot.slane %v356, %v1135
        %v1137 = vmul.f32 %v420, %v1136
        %v1139 = vrot.slane %v1137, 1
        %v1140 = vrot.slane %v1137, 2
        %v1141 = vrot.slane %v1137, 3
        %v1142 = vrot.slane %v1137, 4
        %v1143 = vrot.slane %v1137, 5
        %v1144 = vrot.slane %v1137, 6
        %v1145 = vrot.slane %v1137, 7
        %v1154 = vadd.f32 %v1069, %v1137
        %v1155 = vadd.f32 %v1078, %v1139
        %v1156 = vadd.f32 %v1087, %v1140
        %v1157 = vadd.f32 %v1096, %v1141
        %v1158 = vadd.f32 %v1105, %v1142
        %v1159 = vadd.f32 %v1114, %v1143
        %v1160 = vadd.f32 %v1123, %v1144
        %v1161 = vadd.f32 %v1132, %v1145
        %v1162 = vsub.f32 0.0, %v350
        %v1163 = vmul.f32 %v1162, 1.442695
        %v1164 = vpow.pop %v1163
        %v1165 = vadd.f32 %v1164, 1.0
        %v1166 = vrcp.pop %v1165
        %v1167 = vmul.f32 1.0, %v1166
        %v1168 = vmul.f32 %v350, %v1167
        %v1170 = vrot.slane %v1168, 1
        %v1171 = vrot.slane %v1168, 2
        %v1172 = vrot.slane %v1168, 3
        %v1173 = vrot.slane %v1168, 4
        %v1174 = vrot.slane %v1168, 5
        %v1175 = vrot.slane %v1168, 6
        %v1176 = vrot.slane %v1168, 7
        %1177 = vrot.lane.b32.xlu0 %v1168, 64
        %v1178 = vpop.permute.xlu0 %1177
        %1179 = vrot.lane.b32.xlu0 %v1170, 64
        %v1180 = vpop.permute.xlu0 %1179
        %1181 = vrot.lane.b32.xlu0 %v1171, 64
        %v1182 = vpop.permute.xlu0 %1181
        %1183 = vrot.lane.b32.xlu0 %v1172, 64
        %v1184 = vpop.permute.xlu0 %1183
        %1185 = vrot.lane.b32.xlu0 %v1173, 64
        %v1186 = vpop.permute.xlu0 %1185
        %1187 = vrot.lane.b32.xlu0 %v1174, 64
        %v1188 = vpop.permute.xlu0 %1187
        %1189 = vrot.lane.b32.xlu0 %v1175, 64
        %v1190 = vpop.permute.xlu0 %1189
        %1191 = vrot.lane.b32.xlu0 %v1176, 64
        %v1192 = vpop.permute.xlu0 %1191
        %v1201 = vmul.f32 %v1154, %v1178
        %v1202 = vmul.f32 %v1155, %v1180
        %v1203 = vmul.f32 %v1156, %v1182
        %v1204 = vmul.f32 %v1157, %v1184
        %v1205 = vmul.f32 %v1158, %v1186
        %v1206 = vmul.f32 %v1159, %v1188
        %v1207 = vmul.f32 %v1160, %v1190
        %v1208 = vmul.f32 %v1161, %v1192
        %v1209 = vld [vmem:[%s6] sm:$0xff]
        %v1210 = vld [vmem:[%s6 + $0x8] sm:$0xff]
        %v1211 = vld [vmem:[%s6 + $0x10] sm:$0xff]
        %v1212 = vld [vmem:[%s6 + $0x18] sm:$0xff]
        %v1213 = vld [vmem:[%s6 + $0x20] sm:$0xff]
        %v1214 = vld [vmem:[%s6 + $0x28] sm:$0xff]
        %v1215 = vld [vmem:[%s6 + $0x30] sm:$0xff]
        %v1216 = vld [vmem:[%s6 + $0x38] sm:$0xff]
        %v1225 = vrot.slane %v1202, 7
        %vm1226 = vcmask 1041409
        %v1227 = vsel %vm1226, %v1225, %v1201
        %v1228 = vrot.slane %v1203, 6
        %vm1229 = vcmask 1042434
        %v1230 = vsel %vm1229, %v1228, %v1227
        %v1231 = vrot.slane %v1204, 5
        %vm1232 = vcmask 1043459
        %v1233 = vsel %vm1232, %v1231, %v1230
        %v1234 = vrot.slane %v1205, 4
        %vm1235 = vcmask 1044484
        %v1236 = vsel %vm1235, %v1234, %v1233
        %v1237 = vrot.slane %v1206, 3
        %vm1238 = vcmask 1045509
        %v1239 = vsel %vm1238, %v1237, %v1236
        %v1240 = vrot.slane %v1207, 2
        %vm1241 = vcmask 1046534
        %v1242 = vsel %vm1241, %v1240, %v1239
        %v1243 = vrot.slane %v1208, 1
        %vm1244 = vcmask 1047559
        %v1245 = vsel %vm1244, %v1243, %v1242
        %v1246 = vsel %vm429, %v1245, 0
        %1248 = vmatprep.subr.mxu0 0.0
        %1249 = vmatpush1.msra.mxu0 %v1209
        %1250 = vmatprep.subr.mxu0 0.0
        %1251 = vmatpush1.msra.mxu0 %v1210
        %1252 = vmatprep.subr.mxu0 0.0
        %1253 = vmatpush1.msra.mxu0 %v1211
        %1254 = vmatprep.subr.mxu0 0.0
        %1255 = vmatpush1.msra.mxu0 %v1212
        %1256 = vmatprep.subr.mxu0 0.0
        %1257 = vmatpush1.msra.mxu0 %v1213
        %1258 = vmatprep.subr.mxu0 0.0
        %1259 = vmatpush1.msra.mxu0 %v1214
        %1260 = vmatprep.subr.mxu0 0.0
        %1261 = vmatpush1.msra.mxu0 %v1215
        %1262 = vmatprep.subr.mxu0 0.0
        %1263 = vmatpush1.msra.mxu0 %v1216
        %1264 = vmatprep.subr.mxu0 0.0
        %1265 = vmatpush1.msra.mxu0 0.0
        %1266 = vmatprep.subr.mxu0 0.0
        %1267 = vmatpush1.msra.mxu0 0.0
        %1268 = vmatprep.subr.mxu0 0.0
        %1269 = vmatpush1.msra.mxu0 0.0
        %1270 = vmatprep.subr.mxu0 0.0
        %1271 = vmatpush1.msra.mxu0 0.0
        %1272 = vmatprep.subr.mxu0 0.0
        %1273 = vmatpush1.msra.mxu0 0.0
        %1274 = vmatprep.subr.mxu0 0.0
        %1275 = vmatpush1.msra.mxu0 0.0
        %1276 = vmatprep.subr.mxu0 0.0
        %1277 = vmatpush1.msra.mxu0 0.0
        %1278 = vmatprep.subr.mxu0 0.0
        %1279 = vmatpush1.msra.mxu0 0.0
        %1280 = vmatprep.subr.mxu0 0.0
        %1281 = vmatpush1.msra.mxu0 0.0
        %1282 = vmatprep.subr.mxu0 0.0
        %1283 = vmatpush1.msra.mxu0 0.0
        %1284 = vmatprep.subr.mxu0 0.0
        %1285 = vmatpush1.msra.mxu0 0.0
        %1286 = vmatprep.subr.mxu0 0.0
        %1287 = vmatpush1.msra.mxu0 0.0
        %1288 = vmatprep.subr.mxu0 0.0
        %1289 = vmatpush1.msra.mxu0 0.0
        %1290 = vmatprep.subr.mxu0 0.0
        %1291 = vmatpush1.msra.mxu0 0.0
        %1292 = vmatprep.subr.mxu0 0.0
        %1293 = vmatpush1.msra.mxu0 0.0
        %1294 = vmatprep.subr.mxu0 0.0
        %1295 = vmatpush1.msra.mxu0 0.0
        %1296 = vmatprep.subr.mxu0 0.0
        %1297 = vmatpush1.msra.mxu0 0.0
        %1298 = vmatprep.subr.mxu0 0.0
        %1299 = vmatpush1.msra.mxu0 0.0
        %1300 = vmatprep.subr.mxu0 0.0
        %1301 = vmatpush1.msra.mxu0 0.0
        %1302 = vmatprep.subr.mxu0 0.0
        %1303 = vmatpush1.msra.mxu0 0.0
        %1304 = vmatprep.subr.mxu0 0.0
        %1305 = vmatpush1.msra.mxu0 0.0
        %1306 = vmatprep.subr.mxu0 0.0
        %1307 = vmatpush1.msra.mxu0 0.0
        %1308 = vmatprep.subr.mxu0 0.0
        %1309 = vmatpush1.msra.mxu0 0.0
        %1310 = vmatprep.subr.mxu0 0.0
        %1311 = vmatpush1.msra.mxu0 0.0
        %1312 = vmatprep.mubr.f32.mxu0 0.0
        %1313 = vmatmul.mubr.f32.gmra.mrb[0].mxu0 %v1246
        %v1314 = vpop.f32.mrb[0].mxu0
        %v1315 = vadd.f32 0.0, %v1314
        %v1316 = vpop.f32.mrb[0].mxu0
        %1317 = vdwg.mxu0
        %1318 = vst.msk [vmem:[%s269] sm:$0xff] %vm279, %v1315
        %s1319 = sand.u32 %s181, 1
        %s1320 = scalar_lea.sflag [#allocation3], %s1319
        %s1321 = sand.u32 %s181, 1
        %s1322 = smul.addr %s1321, 8
        %s1323 = scalar_lea.vmem [#allocation2], %s1322
        // Predicated region
        $region49: #{tpu_custom_call.1} parent=47 // pred_check
          %p1324 = pneg %p191
        $region50: #{tpu_custom_call.1} parent=47 // pred_check_branch
          %1326 = sbr.rel (%p1324) target = $region52
        $region51: #{tpu_custom_call.1} parent=47 // pred_region
          %s1328 = ssub.s32 128, 128
          %1329 = vsyncadd %s1320, %s1328
          %s1330 = smul.addr %s21, 128
          %s1331 = scalar_lea.hbm %s7, %s1330
          %s1333 = sshll.u32 %s1323, 4
          %s1334 = int_to_ptr.vmem [resolvable:$true] %s1333
          %1336 = dma.vmem_to_hbm [thread:$0]  %s1334, 128, %s1331, %s1320
        $region52: #{tpu_custom_call.1} parent=47 // pred_fallthru
          _
      $region48: #{tpu_custom_call.1} parent=5 // pred_fallthru
        _
      %p1337 = scmp.le.s32.totalorder 2, %s16
      // Predicated region
      $region53: #{tpu_custom_call.1} parent=5 // pred_check
        %p1338 = pneg %p1337
      $region54: #{tpu_custom_call.1} parent=5 // pred_check_branch
        %1340 = sbr.rel (%p1338) target = $region56
      $region55: #{tpu_custom_call.1} parent=5 // pred_region
        %s1341 = ssub.s32 %s16, 2
        // Predicated region
        $region57: #{tpu_custom_call.1} parent=55 // pred_check
          %p1342 = pneg %p197
        $region58: #{tpu_custom_call.1} parent=55 // pred_check_branch
          %1344 = sbr.rel (%p1342) target = $region60
        $region59: #{tpu_custom_call.1} parent=55 // pred_region
          %s1345 = sand.u32 %s182, 1
          %s1346 = scalar_lea.sflag [#allocation3], %s1345
          %s1347 = sand.u32 %s182, 1
          %s1348 = smul.addr %s1347, 8
          %s1349 = scalar_lea.vmem [#allocation2], %s1348
          %1350 = dma.done %s1346, 128
        $region60: #{tpu_custom_call.1} parent=55 // pred_fallthru
          _
      $region56: #{tpu_custom_call.1} parent=5 // pred_fallthru
        _
    $region6: #{tpu_custom_call.1} parent=1 // loop_footer
      %s20 = sadd.s32 1, %s16
    $region7: #{tpu_custom_call.1} parent=1 // loop_footer_branch
      %15 = sbr.rel target = $region3
    $region8: #{tpu_custom_call.1} parent=1 // loop_exit
      _
    %1351 = vsyncpa [#allocation3], 1
    %s1352 = scalar_lea.sflag [#allocation3], 1
    %1353 = vsyncpa %s1352, 1

</llo_original>
